<compile_context>
chip_gen: v7x
topology: tpu7x:2x2x1
jax: 0.10.0
libtpu: 0.0.40
codegen_flags: <defaults>
</compile_context>

<pallas_src>
import functools

import numpy as np

import jax
import jax.numpy as jnp
from jax import lax
from jax.experimental import pallas as pl
from jax.experimental.pallas import tpu as pltpu

LANE = 128          # output / contraction dims padded to multiples of this
SUBLANE = 16        # bf16 sublane packing: row tiles padded to multiples of 16
TILE_M_MAX = 512    # row tile size (well within v7x's 64 MiB VMEM)


def _round_up(x, m):
    return ((x + m - 1) // m) * m


# ---------------------------------------------------------------------------
# Pallas kernel: (bf16 x bf16 -> f32 MXU matmul) * scale + shift [+ ReLU]
# ---------------------------------------------------------------------------

def _fused_matmul_kernel(x_ref, w_ref, scale_ref, shift_ref, o_ref, *, apply_relu):
    # x: [TILE_M, K], w: [K, N], scale/shift: [1, N] -> o: [TILE_M, N]
    acc = jnp.dot(x_ref[...], w_ref[...], preferred_element_type=jnp.float32)
    y = acc * scale_ref[...] + shift_ref[...]
    if apply_relu:
        y = jnp.maximum(y, 0.0)
    o_ref[...] = y.astype(o_ref.dtype)


def fused_matmul(x, w, scale, shift, *, relu, out_dtype):
    """Returns op(x @ w) with op = (* scale + shift [+ ReLU]); lane/tile padded."""
    m, k = x.shape
    k2, n = w.shape
    assert k == k2, (k, k2)

    k_pad = _round_up(k, LANE)
    n_pad = _round_up(n, LANE)
    tile_m = min(TILE_M_MAX, _round_up(m, SUBLANE))
    m_pad = _round_up(m, tile_m)

    x_p = jnp.pad(x.astype(jnp.bfloat16), ((0, m_pad - m), (0, k_pad - k)))
    w_p = jnp.pad(w.astype(jnp.bfloat16), ((0, k_pad - k), (0, n_pad - n)))
    scale_p = jnp.pad(scale.astype(jnp.float32).reshape(1, n), ((0, 0), (0, n_pad - n)))
    shift_p = jnp.pad(shift.astype(jnp.float32).reshape(1, n), ((0, 0), (0, n_pad - n)))

    out = pl.pallas_call(
        functools.partial(_fused_matmul_kernel, apply_relu=relu),
        out_shape=jax.ShapeDtypeStruct((m_pad, n_pad), out_dtype),
        grid=(m_pad // tile_m,),
        in_specs=[
            pl.BlockSpec((tile_m, k_pad), lambda i: (i, 0)),   # row tile of patches
            pl.BlockSpec((k_pad, n_pad), lambda i: (0, 0)),    # weights (resident)
            pl.BlockSpec((1, n_pad), lambda i: (0, 0)),        # folded BN scale
            pl.BlockSpec((1, n_pad), lambda i: (0, 0)),        # folded bias + BN shift
        ],
        out_specs=pl.BlockSpec((tile_m, n_pad), lambda i: (i, 0)),
        compiler_params=pltpu.CompilerParams(
            dimension_semantics=("parallel",),
        ),
    )(x_p, w_p, scale_p, shift_p)
    return out[:m, :n]


# ---------------------------------------------------------------------------
# Glue: NHWC im2col and layer plumbing (plain JAX)
# ---------------------------------------------------------------------------

def _im2col_nhwc(x_nhwc, kh, kw, stride):
    n, h, w, c = x_nhwc.shape
    oh = (h - kh) // stride + 1
    ow = (w - kw) // stride + 1
    cols = []
    for i in range(kh):
        for j in range(kw):
            cols.append(
                x_nhwc[:, i : i + stride * oh : stride, j : j + stride * ow : stride, :]
            )  # [N, OH, OW, C]
    p = jnp.stack(cols, axis=3)                 # [N, OH, OW, KH*KW, C]
    p = p.reshape(n * oh * ow, kh * kw * c)     # K order = (KH, KW, Cin)
    return p, oh, ow


def _conv_bn_relu_layer(x_nhwc, w, b, gamma, beta, rmean, rvar, *, stride=2, eps=1e-5):
    cout, cin, kh, kw = w.shape
    n = x_nhwc.shape[0]
    patches, oh, ow = _im2col_nhwc(x_nhwc, kh, kw, stride)
    # Reorder PyTorch OIHW weights to the (KH, KW, Cin) patch ordering: [K, Cout].
    w_mat = jnp.transpose(w, (2, 3, 1, 0)).reshape(kh * kw * cin, cout)
    scale = gamma / jnp.sqrt(rvar + eps)        # folded BN scale
    shift = beta + (b - rmean) * scale          # folded conv-bias + BN shift
    out = fused_matmul(patches, w_mat, scale, shift, relu=True, out_dtype=jnp.bfloat16)
    return out.reshape(n, oh, ow, cout)         # stay NHWC between layers


def medium_conv_forward(x_nchw, params):
    # NCHW -> NHWC once at the boundary; activations stay NHWC + bf16 after that.
    x = jnp.transpose(x_nchw, (0, 2, 3, 1)).astype(jnp.bfloat16)
    x = _conv_bn_relu_layer(x, *params["layer1"])
    x = _conv_bn_relu_layer(x, *params["layer2"])
    x = _conv_bn_relu_layer(x, *params["layer3"])
    n = x.shape[0]
    # PyTorch flattens NCHW: convert back only for the head's .view(N, -1).
    flat = jnp.transpose(x, (0, 3, 1, 2)).reshape(n, -1)
    head_w, head_b = params["head"]             # [outputs, K], [outputs]
    ones = jnp.ones_like(head_b)
    return fused_matmul(flat, head_w.T, ones, head_b, relu=False, out_dtype=jnp.float32)


# ---------------------------------------------------------------------------
# Pure-JAX f32 reference (PyTorch semantics) for a sanity check
# ---------------------------------------------------------------------------

def _reference_forward(x_nchw, params, eps=1e-5):
    def layer(x, w, b, gamma, beta, rmean, rvar):
        y = lax.conv_general_dilated(
            x, w, window_strides=(2, 2), padding="VALID",
            dimension_numbers=("NCHW", "OIHW", "NCHW"))
        y = y + b.reshape(1, -1, 1, 1)
        y = (y - rmean.reshape(1, -1, 1, 1)) / jnp.sqrt(rvar.reshape(1, -1, 1, 1) + eps)
        y = y * gamma.reshape(1, -1, 1, 1) + beta.reshape(1, -1, 1, 1)
        return jnp.maximum(y, 0.0)

    x = layer(x_nchw, *params["layer1"])
    x = layer(x, *params["layer2"])
    x = layer(x, *params["layer3"])
    head_w, head_b = params["head"]
    return x.reshape(x.shape[0], -1) @ head_w.T + head_b


# ---------------------------------------------------------------------------
# Deterministic parameter init (shapes from MediumConv.__init__)
# ---------------------------------------------------------------------------

def _conv2d_size_out(size, kernel_size=5, stride=2):
    return (size - (kernel_size - 1) - 1) // stride + 1


def init_params(key, h, w, outputs):
    convw = _conv2d_size_out(_conv2d_size_out(_conv2d_size_out(w)))
    convh = _conv2d_size_out(_conv2d_size_out(_conv2d_size_out(h)))
    linear_input = convw * convh * 32

    keys = jax.random.split(key, 10)

    def conv_params(k1, k2, cout, cin):
        fan_in = cin * 5 * 5
        wgt = jax.random.normal(k1, (cout, cin, 5, 5), jnp.float32) * (fan_in ** -0.5)
        bias = jax.random.normal(k2, (cout,), jnp.float32) * 0.01
        return wgt, bias

    def bn_params(k, c):
        kk = jax.random.split(k, 4)
        gamma = 1.0 + 0.1 * jax.random.normal(kk[0], (c,), jnp.float32)
        beta = 0.1 * jax.random.normal(kk[1], (c,), jnp.float32)
        rmean = 0.05 * jax.random.normal(kk[2], (c,), jnp.float32)
        rvar = 1.0 + 0.1 * jax.nn.softplus(jax.random.normal(kk[3], (c,), jnp.float32))
        return gamma, beta, rmean, rvar

    w1, b1 = conv_params(keys[0], keys[1], 16, 3)
    w2, b2 = conv_params(keys[2], keys[3], 32, 16)
    w3, b3 = conv_params(keys[4], keys[5], 32, 32)
    bn1 = bn_params(keys[6], 16)
    bn2 = bn_params(keys[7], 32)
    bn3 = bn_params(keys[8], 32)

    kh1, kh2 = jax.random.split(keys[9])
    head_w = jax.random.normal(kh1, (outputs, linear_input), jnp.float32) * (
        linear_input ** -0.5
    )
    head_b = 0.01 * jax.random.normal(kh2, (outputs,), jnp.float32)

    return {
        "layer1": (w1, b1, *bn1),
        "layer2": (w2, b2, *bn2),
        "layer3": (w3, b3, *bn3),
        "head": (head_w, head_b),
    }


# ---------------------------------------------------------------------------

if __name__ == "__main__":
    batch, c, h, w, outputs = 2, 3, 32, 32, 4   # conv1 in-channels fixed to 3 (as in the spec)
    key = jax.random.PRNGKey(0)
    k_params, k_x = jax.random.split(key)

    params = init_params(k_params, h, w, outputs)
    x = jax.random.normal(k_x, (batch, c, h, w), jnp.float32)  # NCHW, like PyTorch

    out = jax.jit(medium_conv_forward)(x, params)
    jax.block_until_ready(out)
    assert out.shape == (batch, outputs), out.shape

    ref = _reference_forward(x, params)
    np.testing.assert_allclose(
        np.asarray(out, dtype=np.float32),
        np.asarray(ref, dtype=np.float32),
        rtol=5e-2, atol=5e-2,
    )
    print("KERNEL_OK")
</pallas_src>

<mosaic_0001>
module attributes {stable_mosaic.version = 11 : i64} {
  func.func @_fused_matmul_kernel(%arg0: i32, %arg1: memref<400x128xbf16, #tpu.memory_space<vmem>>, %arg2: memref<128x128xbf16, #tpu.memory_space<vmem>>, %arg3: memref<1x128xf32, #tpu.memory_space<vmem>>, %arg4: memref<1x128xf32, #tpu.memory_space<vmem>>, %arg5: memref<400x128xbf16, #tpu.memory_space<vmem>>) attributes {dimension_semantics = [#tpu.dimension_semantics<parallel>], iteration_bounds = array<i64: 1>, scalar_prefetch = 0 : i64, scratch_operands = 0 : i64, tpu.core_type = #tpu.core_type<tc>, window_params = [{transform_indices = @transform_0, window_bounds = array<i64: 400, 128>}, {pipeline_mode = #tpu.pipeline_mode<synchronous>, transform_indices = @transform_1, window_bounds = array<i64: 128, 128>}, {pipeline_mode = #tpu.pipeline_mode<synchronous>, transform_indices = @transform_2, window_bounds = array<i64: 1, 128>}, {pipeline_mode = #tpu.pipeline_mode<synchronous>, transform_indices = @transform_3, window_bounds = array<i64: 1, 128>}, {transform_indices = @transform_4, window_bounds = array<i64: 400, 128>}]} {
    %c0 = arith.constant 0 : index
    %c0_0 = arith.constant 0 : index
    %0 = vector.load %arg1[%c0, %c0_0] : memref<400x128xbf16, #tpu.memory_space<vmem>>, vector<400x128xbf16>
    %c0_1 = arith.constant 0 : index
    %c0_2 = arith.constant 0 : index
    %1 = vector.load %arg2[%c0_1, %c0_2] : memref<128x128xbf16, #tpu.memory_space<vmem>>, vector<128x128xbf16>
    %cst = arith.constant dense<0.000000e+00> : vector<400x128xf32>
    %2 = tpu.matmul %0, %1, %cst {dimension_numbers = #tpu.dot_dimension_numbers<[1], [0], [0], [1], [0, 0, 1, 1], [], []>} : vector<400x128xbf16>, vector<128x128xbf16>, vector<400x128xf32> -> vector<400x128xf32>
    %c0_3 = arith.constant 0 : index
    %c0_4 = arith.constant 0 : index
    %3 = vector.load %arg3[%c0_3, %c0_4] : memref<1x128xf32, #tpu.memory_space<vmem>>, vector<1x128xf32>
    %4 = vector.broadcast %3 : vector<1x128xf32> to vector<400x128xf32>
    %5 = arith.mulf %2, %4 : vector<400x128xf32>
    %c0_5 = arith.constant 0 : index
    %c0_6 = arith.constant 0 : index
    %6 = vector.load %arg4[%c0_5, %c0_6] : memref<1x128xf32, #tpu.memory_space<vmem>>, vector<1x128xf32>
    %7 = vector.broadcast %6 : vector<1x128xf32> to vector<400x128xf32>
    %8 = arith.addf %5, %7 : vector<400x128xf32>
    %cst_7 = arith.constant 0.000000e+00 : f32
    %9 = vector.broadcast %cst_7 : f32 to vector<400x128xf32>
    %10 = arith.maximumf %8, %9 : vector<400x128xf32>
    %11 = arith.truncf %10 : vector<400x128xf32> to vector<400x128xbf16>
    %c0_8 = arith.constant 0 : index
    %c0_9 = arith.constant 0 : index
    %12 = vector.load %arg5[%c0_8, %c0_9] : memref<400x128xbf16, #tpu.memory_space<vmem>>, vector<400x128xbf16>
    tpu.vector_store %arg5[%c0_8, %c0_9], %11 {strides = array<i32>} : memref<400x128xbf16, #tpu.memory_space<vmem>>, vector<400x128xbf16>,
    return
  }
  func.func @transform_0(%arg0: i32) -> (i32, i32) {
    %c0_i32 = arith.constant 0 : i32
    %c0_i32_0 = arith.constant 0 : i32
    return %arg0, %c0_i32 : i32, i32
  }
  func.func @transform_1(%arg0: i32) -> (i32, i32) {
    %c0_i32 = arith.constant 0 : i32
    %c0_i32_0 = arith.constant 0 : i32
    %c0_i32_1 = arith.constant 0 : i32
    return %c0_i32, %c0_i32_0 : i32, i32
  }
  func.func @transform_2(%arg0: i32) -> (i32, i32) {
    %c0_i32 = arith.constant 0 : i32
    %c0_i32_0 = arith.constant 0 : i32
    %c0_i32_1 = arith.constant 0 : i32
    return %c0_i32, %c0_i32_0 : i32, i32
  }
  func.func @transform_3(%arg0: i32) -> (i32, i32) {
    %c0_i32 = arith.constant 0 : i32
    %c0_i32_0 = arith.constant 0 : i32
    %c0_i32_1 = arith.constant 0 : i32
    return %c0_i32, %c0_i32_0 : i32, i32
  }
  func.func @transform_4(%arg0: i32) -> (i32, i32) {
    %c0_i32 = arith.constant 0 : i32
    %c0_i32_0 = arith.constant 0 : i32
    return %arg0, %c0_i32 : i32, i32
  }
}

module attributes {stable_mosaic.version = 11 : i64} {
  func.func @_fused_matmul_kernel(%arg0: i32, %arg1: memref<64x512xbf16, #tpu.memory_space<vmem>>, %arg2: memref<512x128xbf16, #tpu.memory_space<vmem>>, %arg3: memref<1x128xf32, #tpu.memory_space<vmem>>, %arg4: memref<1x128xf32, #tpu.memory_space<vmem>>, %arg5: memref<64x128xbf16, #tpu.memory_space<vmem>>) attributes {dimension_semantics = [#tpu.dimension_semantics<parallel>], iteration_bounds = array<i64: 1>, scalar_prefetch = 0 : i64, scratch_operands = 0 : i64, tpu.core_type = #tpu.core_type<tc>, window_params = [{transform_indices = @transform_0, window_bounds = array<i64: 64, 512>}, {pipeline_mode = #tpu.pipeline_mode<synchronous>, transform_indices = @transform_1, window_bounds = array<i64: 512, 128>}, {pipeline_mode = #tpu.pipeline_mode<synchronous>, transform_indices = @transform_2, window_bounds = array<i64: 1, 128>}, {pipeline_mode = #tpu.pipeline_mode<synchronous>, transform_indices = @transform_3, window_bounds = array<i64: 1, 128>}, {transform_indices = @transform_4, window_bounds = array<i64: 64, 128>}]} {
    %c0 = arith.constant 0 : index
    %c0_0 = arith.constant 0 : index
    %0 = vector.load %arg1[%c0, %c0_0] : memref<64x512xbf16, #tpu.memory_space<vmem>>, vector<64x512xbf16>
    %c0_1 = arith.constant 0 : index
    %c0_2 = arith.constant 0 : index
    %1 = vector.load %arg2[%c0_1, %c0_2] : memref<512x128xbf16, #tpu.memory_space<vmem>>, vector<512x128xbf16>
    %cst = arith.constant dense<0.000000e+00> : vector<64x128xf32>
    %2 = tpu.matmul %0, %1, %cst {dimension_numbers = #tpu.dot_dimension_numbers<[1], [0], [0], [1], [0, 0, 1, 1], [], []>} : vector<64x512xbf16>, vector<512x128xbf16>, vector<64x128xf32> -> vector<64x128xf32>
    %c0_3 = arith.constant 0 : index
    %c0_4 = arith.constant 0 : index
    %3 = vector.load %arg3[%c0_3, %c0_4] : memref<1x128xf32, #tpu.memory_space<vmem>>, vector<1x128xf32>
    %4 = vector.broadcast %3 : vector<1x128xf32> to vector<64x128xf32>
    %5 = arith.mulf %2, %4 : vector<64x128xf32>
    %c0_5 = arith.constant 0 : index
    %c0_6 = arith.constant 0 : index
    %6 = vector.load %arg4[%c0_5, %c0_6] : memref<1x128xf32, #tpu.memory_space<vmem>>, vector<1x128xf32>
    %7 = vector.broadcast %6 : vector<1x128xf32> to vector<64x128xf32>
    %8 = arith.addf %5, %7 : vector<64x128xf32>
    %cst_7 = arith.constant 0.000000e+00 : f32
    %9 = vector.broadcast %cst_7 : f32 to vector<64x128xf32>
    %10 = arith.maximumf %8, %9 : vector<64x128xf32>
    %11 = arith.truncf %10 : vector<64x128xf32> to vector<64x128xbf16>
    %c0_8 = arith.constant 0 : index
    %c0_9 = arith.constant 0 : index
    %12 = vector.load %arg5[%c0_8, %c0_9] : memref<64x128xbf16, #tpu.memory_space<vmem>>, vector<64x128xbf16>
    tpu.vector_store %arg5[%c0_8, %c0_9], %11 {strides = array<i32>} : memref<64x128xbf16, #tpu.memory_space<vmem>>, vector<64x128xbf16>,
    return
  }
  func.func @transform_0(%arg0: i32) -> (i32, i32) {
    %c0_i32 = arith.constant 0 : i32
    %c0_i32_0 = arith.constant 0 : i32
    return %arg0, %c0_i32 : i32, i32
  }
  func.func @transform_1(%arg0: i32) -> (i32, i32) {
    %c0_i32 = arith.constant 0 : i32
    %c0_i32_0 = arith.constant 0 : i32
    %c0_i32_1 = arith.constant 0 : i32
    return %c0_i32, %c0_i32_0 : i32, i32
  }
  func.func @transform_2(%arg0: i32) -> (i32, i32) {
    %c0_i32 = arith.constant 0 : i32
    %c0_i32_0 = arith.constant 0 : i32
    %c0_i32_1 = arith.constant 0 : i32
    return %c0_i32, %c0_i32_0 : i32, i32
  }
  func.func @transform_3(%arg0: i32) -> (i32, i32) {
    %c0_i32 = arith.constant 0 : i32
    %c0_i32_0 = arith.constant 0 : i32
    %c0_i32_1 = arith.constant 0 : i32
    return %c0_i32, %c0_i32_0 : i32, i32
  }
  func.func @transform_4(%arg0: i32) -> (i32, i32) {
    %c0_i32 = arith.constant 0 : i32
    %c0_i32_0 = arith.constant 0 : i32
    return %arg0, %c0_i32 : i32, i32
  }
}

module attributes {stable_mosaic.version = 11 : i64} {
  func.func @_fused_matmul_kernel(%arg0: i32, %arg1: memref<16x896xbf16, #tpu.memory_space<vmem>>, %arg2: memref<896x128xbf16, #tpu.memory_space<vmem>>, %arg3: memref<1x128xf32, #tpu.memory_space<vmem>>, %arg4: memref<1x128xf32, #tpu.memory_space<vmem>>, %arg5: memref<16x128xbf16, #tpu.memory_space<vmem>>) attributes {dimension_semantics = [#tpu.dimension_semantics<parallel>], iteration_bounds = array<i64: 1>, scalar_prefetch = 0 : i64, scratch_operands = 0 : i64, tpu.core_type = #tpu.core_type<tc>, window_params = [{transform_indices = @transform_0, window_bounds = array<i64: 16, 896>}, {pipeline_mode = #tpu.pipeline_mode<synchronous>, transform_indices = @transform_1, window_bounds = array<i64: 896, 128>}, {pipeline_mode = #tpu.pipeline_mode<synchronous>, transform_indices = @transform_2, window_bounds = array<i64: 1, 128>}, {pipeline_mode = #tpu.pipeline_mode<synchronous>, transform_indices = @transform_3, window_bounds = array<i64: 1, 128>}, {transform_indices = @transform_4, window_bounds = array<i64: 16, 128>}]} {
    %c0 = arith.constant 0 : index
    %c0_0 = arith.constant 0 : index
    %0 = vector.load %arg1[%c0, %c0_0] : memref<16x896xbf16, #tpu.memory_space<vmem>>, vector<16x896xbf16>
    %c0_1 = arith.constant 0 : index
    %c0_2 = arith.constant 0 : index
    %1 = vector.load %arg2[%c0_1, %c0_2] : memref<896x128xbf16, #tpu.memory_space<vmem>>, vector<896x128xbf16>
    %cst = arith.constant dense<0.000000e+00> : vector<16x128xf32>
    %2 = tpu.matmul %0, %1, %cst {dimension_numbers = #tpu.dot_dimension_numbers<[1], [0], [0], [1], [0, 0, 1, 1], [], []>} : vector<16x896xbf16>, vector<896x128xbf16>, vector<16x128xf32> -> vector<16x128xf32>
    %c0_3 = arith.constant 0 : index
    %c0_4 = arith.constant 0 : index
    %3 = vector.load %arg3[%c0_3, %c0_4] : memref<1x128xf32, #tpu.memory_space<vmem>>, vector<1x128xf32>
    %4 = vector.broadcast %3 : vector<1x128xf32> to vector<16x128xf32>
    %5 = arith.mulf %2, %4 : vector<16x128xf32>
    %c0_5 = arith.constant 0 : index
    %c0_6 = arith.constant 0 : index
    %6 = vector.load %arg4[%c0_5, %c0_6] : memref<1x128xf32, #tpu.memory_space<vmem>>, vector<1x128xf32>
    %7 = vector.broadcast %6 : vector<1x128xf32> to vector<16x128xf32>
    %8 = arith.addf %5, %7 : vector<16x128xf32>
    %cst_7 = arith.constant 0.000000e+00 : f32
    %9 = vector.broadcast %cst_7 : f32 to vector<16x128xf32>
    %10 = arith.maximumf %8, %9 : vector<16x128xf32>
    %11 = arith.truncf %10 : vector<16x128xf32> to vector<16x128xbf16>
    %c0_8 = arith.constant 0 : index
    %c0_9 = arith.constant 0 : index
    %12 = vector.load %arg5[%c0_8, %c0_9] : memref<16x128xbf16, #tpu.memory_space<vmem>>, vector<16x128xbf16>
    tpu.vector_store %arg5[%c0_8, %c0_9], %11 {strides = array<i32>} : memref<16x128xbf16, #tpu.memory_space<vmem>>, vector<16x128xbf16>,
    return
  }
  func.func @transform_0(%arg0: i32) -> (i32, i32) {
    %c0_i32 = arith.constant 0 : i32
    %c0_i32_0 = arith.constant 0 : i32
    return %arg0, %c0_i32 : i32, i32
  }
  func.func @transform_1(%arg0: i32) -> (i32, i32) {
    %c0_i32 = arith.constant 0 : i32
    %c0_i32_0 = arith.constant 0 : i32
    %c0_i32_1 = arith.constant 0 : i32
    return %c0_i32, %c0_i32_0 : i32, i32
  }
  func.func @transform_2(%arg0: i32) -> (i32, i32) {
    %c0_i32 = arith.constant 0 : i32
    %c0_i32_0 = arith.constant 0 : i32
    %c0_i32_1 = arith.constant 0 : i32
    return %c0_i32, %c0_i32_0 : i32, i32
  }
  func.func @transform_3(%arg0: i32) -> (i32, i32) {
    %c0_i32 = arith.constant 0 : i32
    %c0_i32_0 = arith.constant 0 : i32
    %c0_i32_1 = arith.constant 0 : i32
    return %c0_i32, %c0_i32_0 : i32, i32
  }
  func.func @transform_4(%arg0: i32) -> (i32, i32) {
    %c0_i32 = arith.constant 0 : i32
    %c0_i32_0 = arith.constant 0 : i32
    return %arg0, %c0_i32 : i32, i32
  }
}

module attributes {stable_mosaic.version = 11 : i64} {
  func.func @_fused_matmul_kernel(%arg0: i32, %arg1: memref<16x128xbf16, #tpu.memory_space<vmem>>, %arg2: memref<128x128xbf16, #tpu.memory_space<vmem>>, %arg3: memref<1x128xf32, #tpu.memory_space<vmem>>, %arg4: memref<1x128xf32, #tpu.memory_space<vmem>>, %arg5: memref<16x128xf32, #tpu.memory_space<vmem>>) attributes {dimension_semantics = [#tpu.dimension_semantics<parallel>], iteration_bounds = array<i64: 1>, scalar_prefetch = 0 : i64, scratch_operands = 0 : i64, tpu.core_type = #tpu.core_type<tc>, window_params = [{transform_indices = @transform_0, window_bounds = array<i64: 16, 128>}, {pipeline_mode = #tpu.pipeline_mode<synchronous>, transform_indices = @transform_1, window_bounds = array<i64: 128, 128>}, {pipeline_mode = #tpu.pipeline_mode<synchronous>, transform_indices = @transform_2, window_bounds = array<i64: 1, 128>}, {pipeline_mode = #tpu.pipeline_mode<synchronous>, transform_indices = @transform_3, window_bounds = array<i64: 1, 128>}, {transform_indices = @transform_4, window_bounds = array<i64: 16, 128>}]} {
    %c0 = arith.constant 0 : index
    %c0_0 = arith.constant 0 : index
    %0 = vector.load %arg1[%c0, %c0_0] : memref<16x128xbf16, #tpu.memory_space<vmem>>, vector<16x128xbf16>
    %c0_1 = arith.constant 0 : index
    %c0_2 = arith.constant 0 : index
    %1 = vector.load %arg2[%c0_1, %c0_2] : memref<128x128xbf16, #tpu.memory_space<vmem>>, vector<128x128xbf16>
    %cst = arith.constant dense<0.000000e+00> : vector<16x128xf32>
    %2 = tpu.matmul %0, %1, %cst {dimension_numbers = #tpu.dot_dimension_numbers<[1], [0], [0], [1], [0, 0, 1, 1], [], []>} : vector<16x128xbf16>, vector<128x128xbf16>, vector<16x128xf32> -> vector<16x128xf32>
    %c0_3 = arith.constant 0 : index
    %c0_4 = arith.constant 0 : index
    %3 = vector.load %arg3[%c0_3, %c0_4] : memref<1x128xf32, #tpu.memory_space<vmem>>, vector<1x128xf32>
    %4 = vector.broadcast %3 : vector<1x128xf32> to vector<16x128xf32>
    %5 = arith.mulf %2, %4 : vector<16x128xf32>
    %c0_5 = arith.constant 0 : index
    %c0_6 = arith.constant 0 : index
    %6 = vector.load %arg4[%c0_5, %c0_6] : memref<1x128xf32, #tpu.memory_space<vmem>>, vector<1x128xf32>
    %7 = vector.broadcast %6 : vector<1x128xf32> to vector<16x128xf32>
    %8 = arith.addf %5, %7 : vector<16x128xf32>
    %c0_7 = arith.constant 0 : index
    %c0_8 = arith.constant 0 : index
    %9 = vector.load %arg5[%c0_7, %c0_8] : memref<16x128xf32, #tpu.memory_space<vmem>>, vector<16x128xf32>
    tpu.vector_store %arg5[%c0_7, %c0_8], %8 {strides = array<i32>} : memref<16x128xf32, #tpu.memory_space<vmem>>, vector<16x128xf32>,
    return
  }
  func.func @transform_0(%arg0: i32) -> (i32, i32) {
    %c0_i32 = arith.constant 0 : i32
    %c0_i32_0 = arith.constant 0 : i32
    return %arg0, %c0_i32 : i32, i32
  }
  func.func @transform_1(%arg0: i32) -> (i32, i32) {
    %c0_i32 = arith.constant 0 : i32
    %c0_i32_0 = arith.constant 0 : i32
    %c0_i32_1 = arith.constant 0 : i32
    return %c0_i32, %c0_i32_0 : i32, i32
  }
  func.func @transform_2(%arg0: i32) -> (i32, i32) {
    %c0_i32 = arith.constant 0 : i32
    %c0_i32_0 = arith.constant 0 : i32
    %c0_i32_1 = arith.constant 0 : i32
    return %c0_i32, %c0_i32_0 : i32, i32
  }
  func.func @transform_3(%arg0: i32) -> (i32, i32) {
    %c0_i32 = arith.constant 0 : i32
    %c0_i32_0 = arith.constant 0 : i32
    %c0_i32_1 = arith.constant 0 : i32
    return %c0_i32, %c0_i32_0 : i32, i32
  }
  func.func @transform_4(%arg0: i32) -> (i32, i32) {
    %c0_i32 = arith.constant 0 : i32
    %c0_i32_0 = arith.constant 0 : i32
    return %arg0, %c0_i32 : i32, i32
  }
}

</mosaic_0001>

<llo_original>
// kernel: medium_conv_forward.4
$region0: #{medium_conv_forward.4}
  #allocation0 [shape = 'u32[]', space=smem, size = 0x4, offset = 0x4, fixed_abs, tag = 'smem constant byte address 0x4 - core index']
  #allocation1 [shape = 'u32[144,128]{1,0:T(1,128)}', space=vmem, size = 0x12000, scoped, tag = 'internal scratch']
  %s0 = inlined_call_operand.vmem [shape: bf16[400,128], index: 0, kind: input, shape index: {}]
  %s1 = inlined_call_operand.vmem [shape: bf16[128,128], index: 1, kind: input, shape index: {}]
  %s2 = inlined_call_operand.vmem [shape: f32[1,128], index: 2, kind: input, shape index: {}]
  %s3 = inlined_call_operand.vmem [shape: f32[1,128], index: 3, kind: input, shape index: {}]
  %s4 = inlined_call_operand.vmem [shape: bf16[400,128], index: 4, kind: output, shape index: {}]
  %s5 = sld [smem:[#allocation0]]
  $region26: #{medium_conv_forward.4} parent=0
    _
  %s7 = ssub.s32 1, %s5
  %s8 = scalar_select 0, %s7, %s5
  // Predicated region
  $region2: #{medium_conv_forward.4} parent=0 // pred_check
    _
  $region3: #{medium_conv_forward.4} parent=0 // pred_check_branch
    %10 = sbr.rel (0) target = $region5
  $region4: #{medium_conv_forward.4} parent=0 // pred_region
    _
  $region5: #{medium_conv_forward.4} parent=0 // pred_fallthru
    _
  // Predicated region
  $region6: #{medium_conv_forward.4} parent=0 // pred_check
    _
  $region7: #{medium_conv_forward.4} parent=0 // pred_check_branch
    %12 = sbr.rel (0) target = $region9
  $region8: #{medium_conv_forward.4} parent=0 // pred_region
    _
  $region9: #{medium_conv_forward.4} parent=0 // pred_fallthru
    _
  // Predicated region
  $region10: #{medium_conv_forward.4} parent=0 // pred_check
    _
  $region11: #{medium_conv_forward.4} parent=0 // pred_check_branch
    %14 = sbr.rel (0) target = $region13
  $region12: #{medium_conv_forward.4} parent=0 // pred_region
    _
  $region13: #{medium_conv_forward.4} parent=0 // pred_fallthru
    _
  // Predicated region
  $region14: #{medium_conv_forward.4} parent=0 // pred_check
    _
  $region15: #{medium_conv_forward.4} parent=0 // pred_check_branch
    %16 = sbr.rel (0) target = $region17
  $region16: #{medium_conv_forward.4} parent=0 // pred_region
    _
  $region17: #{medium_conv_forward.4} parent=0 // pred_fallthru
    _
  %v18 = vld [vmem:[%s0] sm:$0xf]
  %v19 = vld [vmem:[%s0 + $0x4] sm:$0xf]
  %v20 = vld [vmem:[%s0 + $0x8] sm:$0xf]
  %v21 = vld [vmem:[%s0 + $0xc] sm:$0xf]
  %v22 = vld [vmem:[%s0 + $0x10] sm:$0xf]
  %v23 = vld [vmem:[%s0 + $0x14] sm:$0xf]
  %v24 = vld [vmem:[%s0 + $0x18] sm:$0xf]
  %v25 = vld [vmem:[%s0 + $0x1c] sm:$0xf]
  %v26 = vld [vmem:[%s0 + $0x20] sm:$0xf]
  %v27 = vld [vmem:[%s0 + $0x24] sm:$0xf]
  %v28 = vld [vmem:[%s0 + $0x28] sm:$0xf]
  %v29 = vld [vmem:[%s0 + $0x2c] sm:$0xf]
  %v30 = vld [vmem:[%s0 + $0x30] sm:$0xf]
  %v31 = vld [vmem:[%s0 + $0x34] sm:$0xf]
  %v32 = vld [vmem:[%s0 + $0x38] sm:$0xf]
  %v33 = vld [vmem:[%s0 + $0x3c] sm:$0xf]
  %v34 = vld [vmem:[%s0 + $0x40] sm:$0xf]
  %v35 = vld [vmem:[%s0 + $0x44] sm:$0xf]
  %v36 = vld [vmem:[%s0 + $0x48] sm:$0xf]
  %v37 = vld [vmem:[%s0 + $0x4c] sm:$0xf]
  %v38 = vld [vmem:[%s0 + $0x50] sm:$0xf]
  %v39 = vld [vmem:[%s0 + $0x54] sm:$0xf]
  %v40 = vld [vmem:[%s0 + $0x58] sm:$0xf]
  %v41 = vld [vmem:[%s0 + $0x5c] sm:$0xf]
  %v42 = vld [vmem:[%s0 + $0x60] sm:$0xf]
  %v43 = vld [vmem:[%s0 + $0x64] sm:$0xf]
  %v44 = vld [vmem:[%s0 + $0x68] sm:$0xf]
  %v45 = vld [vmem:[%s0 + $0x6c] sm:$0xf]
  %v46 = vld [vmem:[%s0 + $0x70] sm:$0xf]
  %v47 = vld [vmem:[%s0 + $0x74] sm:$0xf]
  %v48 = vld [vmem:[%s0 + $0x78] sm:$0xf]
  %v49 = vld [vmem:[%s0 + $0x7c] sm:$0xf]
  %v50 = vld [vmem:[%s0 + $0x80] sm:$0xf]
  %v51 = vld [vmem:[%s0 + $0x84] sm:$0xf]
  %v52 = vld [vmem:[%s0 + $0x88] sm:$0xf]
  %v53 = vld [vmem:[%s0 + $0x8c] sm:$0xf]
  %v54 = vld [vmem:[%s0 + $0x90] sm:$0xf]
  %v55 = vld [vmem:[%s0 + $0x94] sm:$0xf]
  %v56 = vld [vmem:[%s0 + $0x98] sm:$0xf]
  %v57 = vld [vmem:[%s0 + $0x9c] sm:$0xf]
  %v58 = vld [vmem:[%s0 + $0xa0] sm:$0xf]
  %v59 = vld [vmem:[%s0 + $0xa4] sm:$0xf]
  %v60 = vld [vmem:[%s0 + $0xa8] sm:$0xf]
  %v61 = vld [vmem:[%s0 + $0xac] sm:$0xf]
  %v62 = vld [vmem:[%s0 + $0xb0] sm:$0xf]
  %v63 = vld [vmem:[%s0 + $0xb4] sm:$0xf]
  %v64 = vld [vmem:[%s0 + $0xb8] sm:$0xf]
  %v65 = vld [vmem:[%s0 + $0xbc] sm:$0xf]
  %v66 = vld [vmem:[%s0 + $0xc0] sm:$0xf]
  %v67 = vld [vmem:[%s0 + $0xc4] sm:$0xf]
  %v68 = vld [vmem:[%s1] sm:$0xf]
  %v69 = vld [vmem:[%s1 + $0x4] sm:$0xf]
  %v70 = vld [vmem:[%s1 + $0x8] sm:$0xf]
  %v71 = vld [vmem:[%s1 + $0xc] sm:$0xf]
  %v72 = vld [vmem:[%s1 + $0x10] sm:$0xf]
  %v73 = vld [vmem:[%s1 + $0x14] sm:$0xf]
  %v74 = vld [vmem:[%s1 + $0x18] sm:$0xf]
  %v75 = vld [vmem:[%s1 + $0x1c] sm:$0xf]
  %v76 = vld [vmem:[%s1 + $0x20] sm:$0xf]
  %v77 = vld [vmem:[%s1 + $0x24] sm:$0xf]
  %v78 = vld [vmem:[%s1 + $0x28] sm:$0xf]
  %v79 = vld [vmem:[%s1 + $0x2c] sm:$0xf]
  %v80 = vld [vmem:[%s1 + $0x30] sm:$0xf]
  %v81 = vld [vmem:[%s1 + $0x34] sm:$0xf]
  %v82 = vld [vmem:[%s1 + $0x38] sm:$0xf]
  %v83 = vld [vmem:[%s1 + $0x3c] sm:$0xf]
  %v134 = vunpack.c.l.b16 %v18
  %v135 = vunpack.c.l.b16 %v19
  %v136 = vunpack.c.l.b16 %v20
  %v137 = vunpack.c.l.b16 %v21
  %v138 = vunpack.c.l.b16 %v22
  %v139 = vunpack.c.l.b16 %v23
  %v140 = vunpack.c.l.b16 %v24
  %v141 = vunpack.c.l.b16 %v25
  %v142 = vunpack.c.l.b16 %v26
  %v143 = vunpack.c.l.b16 %v27
  %v144 = vunpack.c.l.b16 %v28
  %v145 = vunpack.c.l.b16 %v29
  %v146 = vunpack.c.l.b16 %v30
  %v147 = vunpack.c.l.b16 %v31
  %v148 = vunpack.c.l.b16 %v32
  %v149 = vunpack.c.l.b16 %v33
  %v150 = vunpack.c.l.b16 %v34
  %v151 = vunpack.c.l.b16 %v35
  %v152 = vunpack.c.l.b16 %v36
  %v153 = vunpack.c.l.b16 %v37
  %v154 = vunpack.c.l.b16 %v38
  %v155 = vunpack.c.l.b16 %v39
  %v156 = vunpack.c.l.b16 %v40
  %v157 = vunpack.c.l.b16 %v41
  %v158 = vunpack.c.l.b16 %v42
  %v159 = vunpack.c.l.b16 %v43
  %v160 = vunpack.c.l.b16 %v44
  %v161 = vunpack.c.l.b16 %v45
  %v162 = vunpack.c.l.b16 %v46
  %v163 = vunpack.c.l.b16 %v47
  %v164 = vunpack.c.l.b16 %v48
  %v165 = vunpack.c.l.b16 %v49
  %v166 = vunpack.c.l.b16 %v50
  %v167 = vunpack.c.l.b16 %v51
  %v168 = vunpack.c.l.b16 %v52
  %v169 = vunpack.c.l.b16 %v53
  %v170 = vunpack.c.l.b16 %v54
  %v171 = vunpack.c.l.b16 %v55
  %v172 = vunpack.c.l.b16 %v56
  %v173 = vunpack.c.l.b16 %v57
  %v174 = vunpack.c.l.b16 %v58
  %v175 = vunpack.c.l.b16 %v59
  %v176 = vunpack.c.l.b16 %v60
  %v177 = vunpack.c.l.b16 %v61
  %v178 = vunpack.c.l.b16 %v62
  %v179 = vunpack.c.l.b16 %v63
  %v180 = vunpack.c.l.b16 %v64
  %v181 = vunpack.c.l.b16 %v65
  %v182 = vunpack.c.l.b16 %v66
  %v183 = vunpack.c.l.b16 %v67
  %v184 = vpack.c.b16 %v135, %v134
  %v185 = vpack.c.b16 %v137, %v136
  %v186 = vpack.c.b16 %v139, %v138
  %v187 = vpack.c.b16 %v141, %v140
  %v188 = vpack.c.b16 %v143, %v142
  %v189 = vpack.c.b16 %v145, %v144
  %v190 = vpack.c.b16 %v147, %v146
  %v191 = vpack.c.b16 %v149, %v148
  %v192 = vpack.c.b16 %v151, %v150
  %v193 = vpack.c.b16 %v153, %v152
  %v194 = vpack.c.b16 %v155, %v154
  %v195 = vpack.c.b16 %v157, %v156
  %v196 = vpack.c.b16 %v159, %v158
  %v197 = vpack.c.b16 %v161, %v160
  %v198 = vpack.c.b16 %v163, %v162
  %v199 = vpack.c.b16 %v165, %v164
  %v200 = vpack.c.b16 %v167, %v166
  %v201 = vpack.c.b16 %v169, %v168
  %v202 = vpack.c.b16 %v171, %v170
  %v203 = vpack.c.b16 %v173, %v172
  %v204 = vpack.c.b16 %v175, %v174
  %v205 = vpack.c.b16 %v177, %v176
  %v206 = vpack.c.b16 %v179, %v178
  %v207 = vpack.c.b16 %v181, %v180
  %v208 = vpack.c.b16 %v183, %v182
  %v250 = vunpack.c.l.b16 %v68
  %v251 = vunpack.c.l.b16 %v69
  %v252 = vunpack.c.l.b16 %v70
  %v253 = vunpack.c.l.b16 %v71
  %v254 = vunpack.c.l.b16 %v72
  %v255 = vunpack.c.l.b16 %v73
  %v256 = vunpack.c.l.b16 %v74
  %v257 = vunpack.c.l.b16 %v75
  %v258 = vunpack.c.l.b16 %v76
  %v259 = vunpack.c.l.b16 %v77
  %v260 = vunpack.c.l.b16 %v78
  %v261 = vunpack.c.l.b16 %v79
  %v262 = vunpack.c.l.b16 %v80
  %v263 = vunpack.c.l.b16 %v81
  %v264 = vunpack.c.l.b16 %v82
  %v265 = vunpack.c.l.b16 %v83
  %v266 = vpack.c.b16 %v251, %v250
  %v267 = vpack.c.b16 %v253, %v252
  %v268 = vpack.c.b16 %v255, %v254
  %v269 = vpack.c.b16 %v257, %v256
  %v270 = vpack.c.b16 %v259, %v258
  %v271 = vpack.c.b16 %v261, %v260
  %v272 = vpack.c.b16 %v263, %v262
  %v273 = vpack.c.b16 %v265, %v264
  %282 = vmatprep.subr.bf16.mxu0 0
  %283 = vmatpush1.bf16.msra.mxu0 %v266
  %284 = vmatprep.subr.bf16.mxu0 0
  %285 = vmatpush1.bf16.msra.mxu0 %v267
  %286 = vmatprep.subr.bf16.mxu0 0
  %287 = vmatpush1.bf16.msra.mxu0 %v268
  %288 = vmatprep.subr.bf16.mxu0 0
  %289 = vmatpush1.bf16.msra.mxu0 %v269
  %290 = vmatprep.subr.bf16.mxu0 0
  %291 = vmatpush1.bf16.msra.mxu0 %v270
  %292 = vmatprep.subr.bf16.mxu0 0
  %293 = vmatpush1.bf16.msra.mxu0 %v271
  %294 = vmatprep.subr.bf16.mxu0 0
  %295 = vmatpush1.bf16.msra.mxu0 %v272
  %296 = vmatprep.subr.bf16.mxu0 0
  %297 = vmatpush1.bf16.msra.mxu0 %v273
  %298 = vmatprep.subr.bf16.mxu0 0
  %299 = vmatpush1.bf16.msra.mxu0 0
  %300 = vmatprep.subr.bf16.mxu0 0
  %301 = vmatpush1.bf16.msra.mxu0 0
  %302 = vmatprep.subr.bf16.mxu0 0
  %303 = vmatpush1.bf16.msra.mxu0 0
  %304 = vmatprep.subr.bf16.mxu0 0
  %305 = vmatpush1.bf16.msra.mxu0 0
  %306 = vmatprep.subr.bf16.mxu0 0
  %307 = vmatpush1.bf16.msra.mxu0 0
  %308 = vmatprep.subr.bf16.mxu0 0
  %309 = vmatpush1.bf16.msra.mxu0 0
  %310 = vmatprep.subr.bf16.mxu0 0
  %311 = vmatpush1.bf16.msra.mxu0 0
  %312 = vmatprep.subr.bf16.mxu0 0
  %313 = vmatpush1.bf16.msra.mxu0 0
  %314 = vmatprep.mubr.bf16.mxu0 0
  %315 = vmatmul.mubr.bf16.gmra.mrb[0].mxu0 %v184
  %v316 = vpop.f32.mrb[0].mxu0
  %v317 = vadd.f32 0.0, %v316
  %v318 = vpop.f32.mrb[0].mxu0
  %v319 = vpop.f32.mrb[0].mxu0
  %v320 = vadd.f32 0.0, %v319
  %v321 = vpop.f32.mrb[0].mxu0
  %322 = vmatprep.mubr.bf16.mxu0 0
  %323 = vmatmul.mubr.bf16.gmra.mrb[0].mxu0 %v185
  %v324 = vpop.f32.mrb[0].mxu0
  %v325 = vadd.f32 0.0, %v324
  %v326 = vpop.f32.mrb[0].mxu0
  %v327 = vpop.f32.mrb[0].mxu0
  %v328 = vadd.f32 0.0, %v327
  %v329 = vpop.f32.mrb[0].mxu0
  %330 = vmatprep.mubr.bf16.mxu0 0
  %331 = vmatmul.mubr.bf16.gmra.mrb[0].mxu0 %v186
  %v332 = vpop.f32.mrb[0].mxu0
  %v333 = vadd.f32 0.0, %v332
  %v334 = vpop.f32.mrb[0].mxu0
  %v335 = vpop.f32.mrb[0].mxu0
  %v336 = vadd.f32 0.0, %v335
  %v337 = vpop.f32.mrb[0].mxu0
  %338 = vmatprep.mubr.bf16.mxu0 0
  %339 = vmatmul.mubr.bf16.gmra.mrb[0].mxu0 %v187
  %v340 = vpop.f32.mrb[0].mxu0
  %v341 = vadd.f32 0.0, %v340
  %v342 = vpop.f32.mrb[0].mxu0
  %v343 = vpop.f32.mrb[0].mxu0
  %v344 = vadd.f32 0.0, %v343
  %v345 = vpop.f32.mrb[0].mxu0
  %346 = vmatprep.mubr.bf16.mxu0 0
  %347 = vmatmul.mubr.bf16.gmra.mrb[0].mxu0 %v188
  %v348 = vpop.f32.mrb[0].mxu0
  %v349 = vadd.f32 0.0, %v348
  %v350 = vpop.f32.mrb[0].mxu0
  %v351 = vpop.f32.mrb[0].mxu0
  %v352 = vadd.f32 0.0, %v351
  %v353 = vpop.f32.mrb[0].mxu0
  %354 = vmatprep.mubr.bf16.mxu0 0
  %355 = vmatmul.mubr.bf16.gmra.mrb[0].mxu0 %v189
  %v356 = vpop.f32.mrb[0].mxu0
  %v357 = vadd.f32 0.0, %v356
  %v358 = vpop.f32.mrb[0].mxu0
  %v359 = vpop.f32.mrb[0].mxu0
  %v360 = vadd.f32 0.0, %v359
  %v361 = vpop.f32.mrb[0].mxu0
  %362 = vmatprep.mubr.bf16.mxu0 0
  %363 = vmatmul.mubr.bf16.gmra.mrb[0].mxu0 %v190
  %v364 = vpop.f32.mrb[0].mxu0
  %v365 = vadd.f32 0.0, %v364
  %v366 = vpop.f32.mrb[0].mxu0
  %v367 = vpop.f32.mrb[0].mxu0
  %v368 = vadd.f32 0.0, %v367
  %v369 = vpop.f32.mrb[0].mxu0
  %370 = vmatprep.mubr.bf16.mxu0 0
  %371 = vmatmul.mubr.bf16.gmra.mrb[0].mxu0 %v191
  %v372 = vpop.f32.mrb[0].mxu0
  %v373 = vadd.f32 0.0, %v372
  %v374 = vpop.f32.mrb[0].mxu0
  %v375 = vpop.f32.mrb[0].mxu0
  %v376 = vadd.f32 0.0, %v375
  %v377 = vpop.f32.mrb[0].mxu0
  %378 = vmatprep.mubr.bf16.mxu0 0
  %379 = vmatmul.mubr.bf16.gmra.mrb[0].mxu0 %v192
  %v380 = vpop.f32.mrb[0].mxu0
  %v381 = vadd.f32 0.0, %v380
  %v382 = vpop.f32.mrb[0].mxu0
  %v383 = vpop.f32.mrb[0].mxu0
  %v384 = vadd.f32 0.0, %v383
  %v385 = vpop.f32.mrb[0].mxu0
  %386 = vmatprep.mubr.bf16.mxu0 0
  %387 = vmatmul.mubr.bf16.gmra.mrb[0].mxu0 %v193
  %v388 = vpop.f32.mrb[0].mxu0
  %v389 = vadd.f32 0.0, %v388
  %v390 = vpop.f32.mrb[0].mxu0
  %v391 = vpop.f32.mrb[0].mxu0
  %v392 = vadd.f32 0.0, %v391
  %v393 = vpop.f32.mrb[0].mxu0
  %394 = vmatprep.mubr.bf16.mxu0 0
  %395 = vmatmul.mubr.bf16.gmra.mrb[0].mxu0 %v194
  %v396 = vpop.f32.mrb[0].mxu0
  %v397 = vadd.f32 0.0, %v396
  %v398 = vpop.f32.mrb[0].mxu0
  %v399 = vpop.f32.mrb[0].mxu0
  %v400 = vadd.f32 0.0, %v399
  %v401 = vpop.f32.mrb[0].mxu0
  %402 = vmatprep.mubr.bf16.mxu0 0
  %403 = vmatmul.mubr.bf16.gmra.mrb[0].mxu0 %v195
  %v404 = vpop.f32.mrb[0].mxu0
  %v405 = vadd.f32 0.0, %v404
  %v406 = vpop.f32.mrb[0].mxu0
  %v407 = vpop.f32.mrb[0].mxu0
  %v408 = vadd.f32 0.0, %v407
  %v409 = vpop.f32.mrb[0].mxu0
  %410 = vmatprep.mubr.bf16.mxu0 0
  %411 = vmatmul.mubr.bf16.gmra.mrb[0].mxu0 %v196
  %v412 = vpop.f32.mrb[0].mxu0
  %v413 = vadd.f32 0.0, %v412
  %v414 = vpop.f32.mrb[0].mxu0
  %v415 = vpop.f32.mrb[0].mxu0
  %v416 = vadd.f32 0.0, %v415
  %v417 = vpop.f32.mrb[0].mxu0
  %418 = vmatprep.mubr.bf16.mxu0 0
  %419 = vmatmul.mubr.bf16.gmra.mrb[0].mxu0 %v197
  %v420 = vpop.f32.mrb[0].mxu0
  %v421 = vadd.f32 0.0, %v420
  %v422 = vpop.f32.mrb[0].mxu0
  %v423 = vpop.f32.mrb[0].mxu0
  %v424 = vadd.f32 0.0, %v423
  %v425 = vpop.f32.mrb[0].mxu0
  %426 = vmatprep.mubr.bf16.mxu0 0
  %427 = vmatmul.mubr.bf16.gmra.mrb[0].mxu0 %v198
  %v428 = vpop.f32.mrb[0].mxu0
  %v429 = vadd.f32 0.0, %v428
  %v430 = vpop.f32.mrb[0].mxu0
  %v431 = vpop.f32.mrb[0].mxu0
  %v432 = vadd.f32 0.0, %v431
  %v433 = vpop.f32.mrb[0].mxu0
  %434 = vmatprep.mubr.bf16.mxu0 0
  %435 = vmatmul.mubr.bf16.gmra.mrb[0].mxu0 %v199
  %v436 = vpop.f32.mrb[0].mxu0
  %v437 = vadd.f32 0.0, %v436
  %v438 = vpop.f32.mrb[0].mxu0
  %v439 = vpop.f32.mrb[0].mxu0
  %v440 = vadd.f32 0.0, %v439
  %v441 = vpop.f32.mrb[0].mxu0
  %442 = vmatprep.mubr.bf16.mxu0 0
  %443 = vmatmul.mubr.bf16.gmra.mrb[0].mxu0 %v200
  %v444 = vpop.f32.mrb[0].mxu0
  %v445 = vadd.f32 0.0, %v444
  %v446 = vpop.f32.mrb[0].mxu0
  %v447 = vpop.f32.mrb[0].mxu0
  %v448 = vadd.f32 0.0, %v447
  %v449 = vpop.f32.mrb[0].mxu0
  %450 = vmatprep.mubr.bf16.mxu0 0
  %451 = vmatmul.mubr.bf16.gmra.mrb[0].mxu0 %v201
  %v452 = vpop.f32.mrb[0].mxu0
  %v453 = vadd.f32 0.0, %v452
  %v454 = vpop.f32.mrb[0].mxu0
  %v455 = vpop.f32.mrb[0].mxu0
  %v456 = vadd.f32 0.0, %v455
  %v457 = vpop.f32.mrb[0].mxu0
  %458 = vmatprep.mubr.bf16.mxu0 0
  %459 = vmatmul.mubr.bf16.gmra.mrb[0].mxu0 %v202
  %v460 = vpop.f32.mrb[0].mxu0
  %v461 = vadd.f32 0.0, %v460
  %v462 = vpop.f32.mrb[0].mxu0
  %v463 = vpop.f32.mrb[0].mxu0
  %v464 = vadd.f32 0.0, %v463
  %v465 = vpop.f32.mrb[0].mxu0
  %466 = vmatprep.mubr.bf16.mxu0 0
  %467 = vmatmul.mubr.bf16.gmra.mrb[0].mxu0 %v203
  %v468 = vpop.f32.mrb[0].mxu0
  %v469 = vadd.f32 0.0, %v468
  %v470 = vpop.f32.mrb[0].mxu0
  %v471 = vpop.f32.mrb[0].mxu0
  %v472 = vadd.f32 0.0, %v471
  %v473 = vpop.f32.mrb[0].mxu0
  %474 = vmatprep.mubr.bf16.mxu0 0
  %475 = vmatmul.mubr.bf16.gmra.mrb[0].mxu0 %v204
  %v476 = vpop.f32.mrb[0].mxu0
  %v477 = vadd.f32 0.0, %v476
  %v478 = vpop.f32.mrb[0].mxu0
  %v479 = vpop.f32.mrb[0].mxu0
  %v480 = vadd.f32 0.0, %v479
  %v481 = vpop.f32.mrb[0].mxu0
  %482 = vmatprep.mubr.bf16.mxu0 0
  %483 = vmatmul.mubr.bf16.gmra.mrb[0].mxu0 %v205
  %v484 = vpop.f32.mrb[0].mxu0
  %v485 = vadd.f32 0.0, %v484
  %v486 = vpop.f32.mrb[0].mxu0
  %v487 = vpop.f32.mrb[0].mxu0
  %v488 = vadd.f32 0.0, %v487
  %v489 = vpop.f32.mrb[0].mxu0
  %490 = vmatprep.mubr.bf16.mxu0 0
  %491 = vmatmul.mubr.bf16.gmra.mrb[0].mxu0 %v206
  %v492 = vpop.f32.mrb[0].mxu0
  %v493 = vadd.f32 0.0, %v492
  %v494 = vpop.f32.mrb[0].mxu0
  %v495 = vpop.f32.mrb[0].mxu0
  %v496 = vadd.f32 0.0, %v495
  %v497 = vpop.f32.mrb[0].mxu0
  %498 = vmatprep.mubr.bf16.mxu0 0
  %499 = vmatmul.mubr.bf16.gmra.mrb[0].mxu0 %v207
  %v500 = vpop.f32.mrb[0].mxu0
  %v501 = vadd.f32 0.0, %v500
  %v502 = vpop.f32.mrb[0].mxu0
  %v503 = vpop.f32.mrb[0].mxu0
  %v504 = vadd.f32 0.0, %v503
  %v505 = vpop.f32.mrb[0].mxu0
  %506 = vmatprep.mubr.bf16.mxu0 0
  %507 = vmatmul.mubr.bf16.gmra.mrb[0].mxu0 %v208
  %v508 = vpop.f32.mrb[0].mxu0
  %v509 = vadd.f32 0.0, %v508
  %v510 = vpop.f32.mrb[0].mxu0
  %v511 = vpop.f32.mrb[0].mxu0
  %v512 = vadd.f32 0.0, %v511
  %v513 = vpop.f32.mrb[0].mxu0
  %514 = vdwg.mxu0
  %v515 = vld [vmem:[%s2] sm:$0x1]
  %v517 = vlaneseq
  %v518 = vshrl.u32 %v517, 7
  %v519 = vsub.s32 0, %v518
  %v520 = vrot.slane %v515, %v519
  %v522 = vmul.f32 %v317, %v520
  %v523 = vmul.f32 %v320, %v520
  %v524 = vmul.f32 %v325, %v520
  %v525 = vmul.f32 %v328, %v520
  %v526 = vmul.f32 %v333, %v520
  %v527 = vmul.f32 %v336, %v520
  %v528 = vmul.f32 %v341, %v520
  %v529 = vmul.f32 %v344, %v520
  %v530 = vmul.f32 %v349, %v520
  %v531 = vmul.f32 %v352, %v520
  %v532 = vmul.f32 %v357, %v520
  %v533 = vmul.f32 %v360, %v520
  %v534 = vmul.f32 %v365, %v520
  %v535 = vmul.f32 %v368, %v520
  %v536 = vmul.f32 %v373, %v520
  %v537 = vmul.f32 %v376, %v520
  %v538 = vmul.f32 %v381, %v520
  %v539 = vmul.f32 %v384, %v520
  %v540 = vmul.f32 %v389, %v520
  %v541 = vmul.f32 %v392, %v520
  %v542 = vmul.f32 %v397, %v520
  %v543 = vmul.f32 %v400, %v520
  %v544 = vmul.f32 %v405, %v520
  %v545 = vmul.f32 %v408, %v520
  %v546 = vmul.f32 %v413, %v520
  %v547 = vmul.f32 %v416, %v520
  %v548 = vmul.f32 %v421, %v520
  %v549 = vmul.f32 %v424, %v520
  %v550 = vmul.f32 %v429, %v520
  %v551 = vmul.f32 %v432, %v520
  %v552 = vmul.f32 %v437, %v520
  %v553 = vmul.f32 %v440, %v520
  %v554 = vmul.f32 %v445, %v520
  %v555 = vmul.f32 %v448, %v520
  %v556 = vmul.f32 %v453, %v520
  %v557 = vmul.f32 %v456, %v520
  %v558 = vmul.f32 %v461, %v520
  %v559 = vmul.f32 %v464, %v520
  %v560 = vmul.f32 %v469, %v520
  %v561 = vmul.f32 %v472, %v520
  %v562 = vmul.f32 %v477, %v520
  %v563 = vmul.f32 %v480, %v520
  %v564 = vmul.f32 %v485, %v520
  %v565 = vmul.f32 %v488, %v520
  %v566 = vmul.f32 %v493, %v520
  %v567 = vmul.f32 %v496, %v520
  %v568 = vmul.f32 %v501, %v520
  %v569 = vmul.f32 %v504, %v520
  %v570 = vmul.f32 %v509, %v520
  %v571 = vmul.f32 %v512, %v520
  %v572 = vld [vmem:[%s3] sm:$0x1]
  %v574 = vlaneseq
  %v575 = vshrl.u32 %v574, 7
  %v576 = vsub.s32 0, %v575
  %v577 = vrot.slane %v572, %v576
  %v579 = vadd.f32 %v522, %v577
  %v580 = vadd.f32 %v523, %v577
  %v581 = vadd.f32 %v524, %v577
  %v582 = vadd.f32 %v525, %v577
  %v583 = vadd.f32 %v526, %v577
  %v584 = vadd.f32 %v527, %v577
  %v585 = vadd.f32 %v528, %v577
  %v586 = vadd.f32 %v529, %v577
  %v587 = vadd.f32 %v530, %v577
  %v588 = vadd.f32 %v531, %v577
  %v589 = vadd.f32 %v532, %v577
  %v590 = vadd.f32 %v533, %v577
  %v591 = vadd.f32 %v534, %v577
  %v592 = vadd.f32 %v535, %v577
  %v593 = vadd.f32 %v536, %v577
  %v594 = vadd.f32 %v537, %v577
  %v595 = vadd.f32 %v538, %v577
  %v596 = vadd.f32 %v539, %v577
  %v597 = vadd.f32 %v540, %v577
  %v598 = vadd.f32 %v541, %v577
  %v599 = vadd.f32 %v542, %v577
  %v600 = vadd.f32 %v543, %v577
  %v601 = vadd.f32 %v544, %v577
  %v602 = vadd.f32 %v545, %v577
  %v603 = vadd.f32 %v546, %v577
  %v604 = vadd.f32 %v547, %v577
  %v605 = vadd.f32 %v548, %v577
  %v606 = vadd.f32 %v549, %v577
  %v607 = vadd.f32 %v550, %v577
  %v608 = vadd.f32 %v551, %v577
  %v609 = vadd.f32 %v552, %v577
  %v610 = vadd.f32 %v553, %v577
  %v611 = vadd.f32 %v554, %v577
  %v612 = vadd.f32 %v555, %v577
  %v613 = vadd.f32 %v556, %v577
  %v614 = vadd.f32 %v557, %v577
  %v615 = vadd.f32 %v558, %v577
  %v616 = vadd.f32 %v559, %v577
  %v617 = vadd.f32 %v560, %v577
  %v618 = vadd.f32 %v561, %v577
  %v619 = vadd.f32 %v562, %v577
  %v620 = vadd.f32 %v563, %v577
  %v621 = vadd.f32 %v564, %v577
  %v622 = vadd.f32 %v565, %v577
  %v623 = vadd.f32 %v566, %v577
  %v624 = vadd.f32 %v567, %v577
  %v625 = vadd.f32 %v568, %v577
  %v626 = vadd.f32 %v569, %v577
  %v627 = vadd.f32 %v570, %v577
  %v628 = vadd.f32 %v571, %v577
  %v629 = vmax.f32 %v579, 0.0
  %v630 = vmax.f32 %v580, 0.0
  %v631 = vmax.f32 %v581, 0.0
  %v632 = vmax.f32 %v582, 0.0
  %v633 = vmax.f32 %v583, 0.0
  %v634 = vmax.f32 %v584, 0.0
  %v635 = vmax.f32 %v585, 0.0
  %v636 = vmax.f32 %v586, 0.0
  %v637 = vmax.f32 %v587, 0.0
  %v638 = vmax.f32 %v588, 0.0
  %v639 = vmax.f32 %v589, 0.0
  %v640 = vmax.f32 %v590, 0.0
  %v641 = vmax.f32 %v591, 0.0
  %v642 = vmax.f32 %v592, 0.0
  %v643 = vmax.f32 %v593, 0.0
  %v644 = vmax.f32 %v594, 0.0
  %v645 = vmax.f32 %v595, 0.0
  %v646 = vmax.f32 %v596, 0.0
  %v647 = vmax.f32 %v597, 0.0
  %v648 = vmax.f32 %v598, 0.0
  %v649 = vmax.f32 %v599, 0.0
  %v650 = vmax.f32 %v600, 0.0
  %v651 = vmax.f32 %v601, 0.0
  %v652 = vmax.f32 %v602, 0.0
  %v653 = vmax.f32 %v603, 0.0
  %v654 = vmax.f32 %v604, 0.0
  %v655 = vmax.f32 %v605, 0.0
  %v656 = vmax.f32 %v606, 0.0
  %v657 = vmax.f32 %v607, 0.0
  %v658 = vmax.f32 %v608, 0.0
  %v659 = vmax.f32 %v609, 0.0
  %v660 = vmax.f32 %v610, 0.0
  %v661 = vmax.f32 %v611, 0.0
  %v662 = vmax.f32 %v612, 0.0
  %v663 = vmax.f32 %v613, 0.0
  %v664 = vmax.f32 %v614, 0.0
  %v665 = vmax.f32 %v615, 0.0
  %v666 = vmax.f32 %v616, 0.0
  %v667 = vmax.f32 %v617, 0.0
  %v668 = vmax.f32 %v618, 0.0
  %v669 = vmax.f32 %v619, 0.0
  %v670 = vmax.f32 %v620, 0.0
  %v671 = vmax.f32 %v621, 0.0
  %v672 = vmax.f32 %v622, 0.0
  %v673 = vmax.f32 %v623, 0.0
  %v674 = vmax.f32 %v624, 0.0
  %v675 = vmax.f32 %v625, 0.0
  %v676 = vmax.f32 %v626, 0.0
  %v677 = vmax.f32 %v627, 0.0
  %v678 = vmax.f32 %v628, 0.0
  %v679 = vpack.c.bf16 %v630, %v629
  %v680 = vpack.c.bf16 %v632, %v631
  %v681 = vpack.c.bf16 %v634, %v633
  %v682 = vpack.c.bf16 %v636, %v635
  %v683 = vpack.c.bf16 %v638, %v637
  %v684 = vpack.c.bf16 %v640, %v639
  %v685 = vpack.c.bf16 %v642, %v641
  %v686 = vpack.c.bf16 %v644, %v643
  %v687 = vpack.c.bf16 %v646, %v645
  %v688 = vpack.c.bf16 %v648, %v647
  %v689 = vpack.c.bf16 %v650, %v649
  %v690 = vpack.c.bf16 %v652, %v651
  %v691 = vpack.c.bf16 %v654, %v653
  %v692 = vpack.c.bf16 %v656, %v655
  %v693 = vpack.c.bf16 %v658, %v657
  %v694 = vpack.c.bf16 %v660, %v659
  %v695 = vpack.c.bf16 %v662, %v661
  %v696 = vpack.c.bf16 %v664, %v663
  %v697 = vpack.c.bf16 %v666, %v665
  %v698 = vpack.c.bf16 %v668, %v667
  %v699 = vpack.c.bf16 %v670, %v669
  %v700 = vpack.c.bf16 %v672, %v671
  %v701 = vpack.c.bf16 %v674, %v673
  %v702 = vpack.c.bf16 %v676, %v675
  %v703 = vpack.c.bf16 %v678, %v677
  %v729 = vunpack.c.l.b16 %v679
  %v730 = vunpack.c.h.b16 %v679
  %v731 = vunpack.c.l.b16 %v680
  %v732 = vunpack.c.h.b16 %v680
  %v733 = vunpack.c.l.b16 %v681
  %v734 = vunpack.c.h.b16 %v681
  %v735 = vunpack.c.l.b16 %v682
  %v736 = vunpack.c.h.b16 %v682
  %v737 = vunpack.c.l.b16 %v683
  %v738 = vunpack.c.h.b16 %v683
  %v739 = vunpack.c.l.b16 %v684
  %v740 = vunpack.c.h.b16 %v684
  %v741 = vunpack.c.l.b16 %v685
  %v742 = vunpack.c.h.b16 %v685
  %v743 = vunpack.c.l.b16 %v686
  %v744 = vunpack.c.h.b16 %v686
  %v745 = vunpack.c.l.b16 %v687
  %v746 = vunpack.c.h.b16 %v687
  %v747 = vunpack.c.l.b16 %v688
  %v748 = vunpack.c.h.b16 %v688
  %v749 = vunpack.c.l.b16 %v689
  %v750 = vunpack.c.h.b16 %v689
  %v751 = vunpack.c.l.b16 %v690
  %v752 = vunpack.c.h.b16 %v690
  %v753 = vunpack.c.l.b16 %v691
  %v754 = vunpack.c.h.b16 %v691
  %v755 = vunpack.c.l.b16 %v692
  %v756 = vunpack.c.h.b16 %v692
  %v757 = vunpack.c.l.b16 %v693
  %v758 = vunpack.c.h.b16 %v693
  %v759 = vunpack.c.l.b16 %v694
  %v760 = vunpack.c.h.b16 %v694
  %v761 = vunpack.c.l.b16 %v695
  %v762 = vunpack.c.h.b16 %v695
  %v763 = vunpack.c.l.b16 %v696
  %v764 = vunpack.c.h.b16 %v696
  %v765 = vunpack.c.l.b16 %v697
  %v766 = vunpack.c.h.b16 %v697
  %v767 = vunpack.c.l.b16 %v698
  %v768 = vunpack.c.h.b16 %v698
  %v769 = vunpack.c.l.b16 %v699
  %v770 = vunpack.c.h.b16 %v699
  %v771 = vunpack.c.l.b16 %v700
  %v772 = vunpack.c.h.b16 %v700
  %v773 = vunpack.c.l.b16 %v701
  %v774 = vunpack.c.h.b16 %v701
  %v775 = vunpack.c.l.b16 %v702
  %v776 = vunpack.c.h.b16 %v702
  %v777 = vunpack.c.l.b16 %v703
  %v778 = vunpack.c.h.b16 %v703
  %v779 = vpack.c.b16 %v729, %v729
  %v780 = vpack.c.b16 %v730, %v730
  %v781 = vpack.c.b16 %v731, %v731
  %v782 = vpack.c.b16 %v732, %v732
  %v783 = vpack.c.b16 %v733, %v733
  %v784 = vpack.c.b16 %v734, %v734
  %v785 = vpack.c.b16 %v735, %v735
  %v786 = vpack.c.b16 %v736, %v736
  %v787 = vpack.c.b16 %v737, %v737
  %v788 = vpack.c.b16 %v738, %v738
  %v789 = vpack.c.b16 %v739, %v739
  %v790 = vpack.c.b16 %v740, %v740
  %v791 = vpack.c.b16 %v741, %v741
  %v792 = vpack.c.b16 %v742, %v742
  %v793 = vpack.c.b16 %v743, %v743
  %v794 = vpack.c.b16 %v744, %v744
  %v795 = vpack.c.b16 %v745, %v745
  %v796 = vpack.c.b16 %v746, %v746
  %v797 = vpack.c.b16 %v747, %v747
  %v798 = vpack.c.b16 %v748, %v748
  %v799 = vpack.c.b16 %v749, %v749
  %v800 = vpack.c.b16 %v750, %v750
  %v801 = vpack.c.b16 %v751, %v751
  %v802 = vpack.c.b16 %v752, %v752
  %v803 = vpack.c.b16 %v753, %v753
  %v804 = vpack.c.b16 %v754, %v754
  %v805 = vpack.c.b16 %v755, %v755
  %v806 = vpack.c.b16 %v756, %v756
  %v807 = vpack.c.b16 %v757, %v757
  %v808 = vpack.c.b16 %v758, %v758
  %v809 = vpack.c.b16 %v759, %v759
  %v810 = vpack.c.b16 %v760, %v760
  %v811 = vpack.c.b16 %v761, %v761
  %v812 = vpack.c.b16 %v762, %v762
  %v813 = vpack.c.b16 %v763, %v763
  %v814 = vpack.c.b16 %v764, %v764
  %v815 = vpack.c.b16 %v765, %v765
  %v816 = vpack.c.b16 %v766, %v766
  %v817 = vpack.c.b16 %v767, %v767
  %v818 = vpack.c.b16 %v768, %v768
  %v819 = vpack.c.b16 %v769, %v769
  %v820 = vpack.c.b16 %v770, %v770
  %v821 = vpack.c.b16 %v771, %v771
  %v822 = vpack.c.b16 %v772, %v772
  %v823 = vpack.c.b16 %v773, %v773
  %v824 = vpack.c.b16 %v774, %v774
  %v825 = vpack.c.b16 %v775, %v775
  %v826 = vpack.c.b16 %v776, %v776
  %v827 = vpack.c.b16 %v777, %v777
  %v828 = vpack.c.b16 %v778, %v778
  %879 = vst [vmem:[%s4] sm:$0xf] %v779
  %880 = vst [vmem:[%s4 + $0x4] sm:$0xf] %v780
  %881 = vst [vmem:[%s4 + $0x8] sm:$0xf] %v781
  %882 = vst [vmem:[%s4 + $0xc] sm:$0xf] %v782
  %883 = vst [vmem:[%s4 + $0x10] sm:$0xf] %v783
  %884 = vst [vmem:[%s4 + $0x14] sm:$0xf] %v784
  %885 = vst [vmem:[%s4 + $0x18] sm:$0xf] %v785
  %886 = vst [vmem:[%s4 + $0x1c] sm:$0xf] %v786
  %887 = vst [vmem:[%s4 + $0x20] sm:$0xf] %v787
  %888 = vst [vmem:[%s4 + $0x24] sm:$0xf] %v788
  %889 = vst [vmem:[%s4 + $0x28] sm:$0xf] %v789
  %890 = vst [vmem:[%s4 + $0x2c] sm:$0xf] %v790
  %891 = vst [vmem:[%s4 + $0x30] sm:$0xf] %v791
  %892 = vst [vmem:[%s4 + $0x34] sm:$0xf] %v792
  %893 = vst [vmem:[%s4 + $0x38] sm:$0xf] %v793
  %894 = vst [vmem:[%s4 + $0x3c] sm:$0xf] %v794
  %895 = vst [vmem:[%s4 + $0x40] sm:$0xf] %v795
  %896 = vst [vmem:[%s4 + $0x44] sm:$0xf] %v796
  %897 = vst [vmem:[%s4 + $0x48] sm:$0xf] %v797
  %898 = vst [vmem:[%s4 + $0x4c] sm:$0xf] %v798
  %899 = vst [vmem:[%s4 + $0x50] sm:$0xf] %v799
  %900 = vst [vmem:[%s4 + $0x54] sm:$0xf] %v800
  %901 = vst [vmem:[%s4 + $0x58] sm:$0xf] %v801
  %902 = vst [vmem:[%s4 + $0x5c] sm:$0xf] %v802
  %903 = vst [vmem:[%s4 + $0x60] sm:$0xf] %v803
  %904 = vst [vmem:[%s4 + $0x64] sm:$0xf] %v804
  %905 = vst [vmem:[%s4 + $0x68] sm:$0xf] %v805
  %906 = vst [vmem:[%s4 + $0x6c] sm:$0xf] %v806
  %907 = vst [vmem:[%s4 + $0x70] sm:$0xf] %v807
  %908 = vst [vmem:[%s4 + $0x74] sm:$0xf] %v808
  %909 = vst [vmem:[%s4 + $0x78] sm:$0xf] %v809
  %910 = vst [vmem:[%s4 + $0x7c] sm:$0xf] %v810
  %911 = vst [vmem:[%s4 + $0x80] sm:$0xf] %v811
  %912 = vst [vmem:[%s4 + $0x84] sm:$0xf] %v812
  %913 = vst [vmem:[%s4 + $0x88] sm:$0xf] %v813
  %914 = vst [vmem:[%s4 + $0x8c] sm:$0xf] %v814
  %915 = vst [vmem:[%s4 + $0x90] sm:$0xf] %v815
  %916 = vst [vmem:[%s4 + $0x94] sm:$0xf] %v816
  %917 = vst [vmem:[%s4 + $0x98] sm:$0xf] %v817
  %918 = vst [vmem:[%s4 + $0x9c] sm:$0xf] %v818
  %919 = vst [vmem:[%s4 + $0xa0] sm:$0xf] %v819
  %920 = vst [vmem:[%s4 + $0xa4] sm:$0xf] %v820
  %921 = vst [vmem:[%s4 + $0xa8] sm:$0xf] %v821
  %922 = vst [vmem:[%s4 + $0xac] sm:$0xf] %v822
  %923 = vst [vmem:[%s4 + $0xb0] sm:$0xf] %v823
  %924 = vst [vmem:[%s4 + $0xb4] sm:$0xf] %v824
  %925 = vst [vmem:[%s4 + $0xb8] sm:$0xf] %v825
  %926 = vst [vmem:[%s4 + $0xbc] sm:$0xf] %v826
  %927 = vst [vmem:[%s4 + $0xc0] sm:$0xf] %v827
  %928 = vst [vmem:[%s4 + $0xc4] sm:$0xf] %v828
  // Predicated region
  $region18: #{medium_conv_forward.4} parent=0 // pred_check
    _
  $region19: #{medium_conv_forward.4} parent=0 // pred_check_branch
    %930 = sbr.rel (0) target = $region21
  $region20: #{medium_conv_forward.4} parent=0 // pred_region
    _
  $region21: #{medium_conv_forward.4} parent=0 // pred_fallthru
    _
  // Predicated region
  $region22: #{medium_conv_forward.4} parent=0 // pred_check
    _
  $region23: #{medium_conv_forward.4} parent=0 // pred_check_branch
    %932 = sbr.rel (0) target = $region25
  $region24: #{medium_conv_forward.4} parent=0 // pred_region
    _
  $region25: #{medium_conv_forward.4} parent=0 // pred_fallthru
    _

// kernel: medium_conv_forward.5
$region0: #{medium_conv_forward.5}
  #allocation0 [shape = 'u32[]', space=smem, size = 0x4, offset = 0x4, fixed_abs, tag = 'smem constant byte address 0x4 - core index']
  #allocation1 [shape = 'u32[144,128]{1,0:T(1,128)}', space=vmem, size = 0x12000, scoped, tag = 'internal scratch']
  %s0 = inlined_call_operand.vmem [shape: bf16[64,512], index: 0, kind: input, shape index: {}]
  %s1 = inlined_call_operand.vmem [shape: bf16[512,128], index: 1, kind: input, shape index: {}]
  %s2 = inlined_call_operand.vmem [shape: f32[1,128], index: 2, kind: input, shape index: {}]
  %s3 = inlined_call_operand.vmem [shape: f32[1,128], index: 3, kind: input, shape index: {}]
  %s4 = inlined_call_operand.vmem [shape: bf16[64,128], index: 4, kind: output, shape index: {}]
  %s5 = sld [smem:[#allocation0]]
  $region26: #{medium_conv_forward.5} parent=0
    _
  %s7 = ssub.s32 1, %s5
  %s8 = scalar_select 0, %s7, %s5
  // Predicated region
  $region2: #{medium_conv_forward.5} parent=0 // pred_check
    _
  $region3: #{medium_conv_forward.5} parent=0 // pred_check_branch
    %10 = sbr.rel (0) target = $region5
  $region4: #{medium_conv_forward.5} parent=0 // pred_region
    _
  $region5: #{medium_conv_forward.5} parent=0 // pred_fallthru
    _
  // Predicated region
  $region6: #{medium_conv_forward.5} parent=0 // pred_check
    _
  $region7: #{medium_conv_forward.5} parent=0 // pred_check_branch
    %12 = sbr.rel (0) target = $region9
  $region8: #{medium_conv_forward.5} parent=0 // pred_region
    _
  $region9: #{medium_conv_forward.5} parent=0 // pred_fallthru
    _
  // Predicated region
  $region10: #{medium_conv_forward.5} parent=0 // pred_check
    _
  $region11: #{medium_conv_forward.5} parent=0 // pred_check_branch
    %14 = sbr.rel (0) target = $region13
  $region12: #{medium_conv_forward.5} parent=0 // pred_region
    _
  $region13: #{medium_conv_forward.5} parent=0 // pred_fallthru
    _
  // Predicated region
  $region14: #{medium_conv_forward.5} parent=0 // pred_check
    _
  $region15: #{medium_conv_forward.5} parent=0 // pred_check_branch
    %16 = sbr.rel (0) target = $region17
  $region16: #{medium_conv_forward.5} parent=0 // pred_region
    _
  $region17: #{medium_conv_forward.5} parent=0 // pred_fallthru
    _
  %v18 = vld [vmem:[%s0] sm:$0xff]
  %v19 = vld [vmem:[%s0 + $0x8] sm:$0xff]
  %v20 = vld [vmem:[%s0 + $0x10] sm:$0xff]
  %v21 = vld [vmem:[%s0 + $0x18] sm:$0xff]
  %v22 = vld [vmem:[%s0 + $0x20] sm:$0xff]
  %v23 = vld [vmem:[%s0 + $0x28] sm:$0xff]
  %v24 = vld [vmem:[%s0 + $0x30] sm:$0xff]
  %v25 = vld [vmem:[%s0 + $0x38] sm:$0xff]
  %v26 = vld [vmem:[%s0 + $0x40] sm:$0xff]
  %v27 = vld [vmem:[%s0 + $0x48] sm:$0xff]
  %v28 = vld [vmem:[%s0 + $0x50] sm:$0xff]
  %v29 = vld [vmem:[%s0 + $0x58] sm:$0xff]
  %v30 = vld [vmem:[%s0 + $0x60] sm:$0xff]
  %v31 = vld [vmem:[%s0 + $0x68] sm:$0xff]
  %v32 = vld [vmem:[%s0 + $0x70] sm:$0xff]
  %v33 = vld [vmem:[%s0 + $0x78] sm:$0xff]
  %v34 = vld [vmem:[%s1] sm:$0xf]
  %v35 = vld [vmem:[%s1 + $0x4] sm:$0xf]
  %v36 = vld [vmem:[%s1 + $0x8] sm:$0xf]
  %v37 = vld [vmem:[%s1 + $0xc] sm:$0xf]
  %v38 = vld [vmem:[%s1 + $0x10] sm:$0xf]
  %v39 = vld [vmem:[%s1 + $0x14] sm:$0xf]
  %v40 = vld [vmem:[%s1 + $0x18] sm:$0xf]
  %v41 = vld [vmem:[%s1 + $0x1c] sm:$0xf]
  %v42 = vld [vmem:[%s1 + $0x20] sm:$0xf]
  %v43 = vld [vmem:[%s1 + $0x24] sm:$0xf]
  %v44 = vld [vmem:[%s1 + $0x28] sm:$0xf]
  %v45 = vld [vmem:[%s1 + $0x2c] sm:$0xf]
  %v46 = vld [vmem:[%s1 + $0x30] sm:$0xf]
  %v47 = vld [vmem:[%s1 + $0x34] sm:$0xf]
  %v48 = vld [vmem:[%s1 + $0x38] sm:$0xf]
  %v49 = vld [vmem:[%s1 + $0x3c] sm:$0xf]
  %v50 = vld [vmem:[%s1 + $0x40] sm:$0xf]
  %v51 = vld [vmem:[%s1 + $0x44] sm:$0xf]
  %v52 = vld [vmem:[%s1 + $0x48] sm:$0xf]
  %v53 = vld [vmem:[%s1 + $0x4c] sm:$0xf]
  %v54 = vld [vmem:[%s1 + $0x50] sm:$0xf]
  %v55 = vld [vmem:[%s1 + $0x54] sm:$0xf]
  %v56 = vld [vmem:[%s1 + $0x58] sm:$0xf]
  %v57 = vld [vmem:[%s1 + $0x5c] sm:$0xf]
  %v58 = vld [vmem:[%s1 + $0x60] sm:$0xf]
  %v59 = vld [vmem:[%s1 + $0x64] sm:$0xf]
  %v60 = vld [vmem:[%s1 + $0x68] sm:$0xf]
  %v61 = vld [vmem:[%s1 + $0x6c] sm:$0xf]
  %v62 = vld [vmem:[%s1 + $0x70] sm:$0xf]
  %v63 = vld [vmem:[%s1 + $0x74] sm:$0xf]
  %v64 = vld [vmem:[%s1 + $0x78] sm:$0xf]
  %v65 = vld [vmem:[%s1 + $0x7c] sm:$0xf]
  %v66 = vld [vmem:[%s1 + $0x80] sm:$0xf]
  %v67 = vld [vmem:[%s1 + $0x84] sm:$0xf]
  %v68 = vld [vmem:[%s1 + $0x88] sm:$0xf]
  %v69 = vld [vmem:[%s1 + $0x8c] sm:$0xf]
  %v70 = vld [vmem:[%s1 + $0x90] sm:$0xf]
  %v71 = vld [vmem:[%s1 + $0x94] sm:$0xf]
  %v72 = vld [vmem:[%s1 + $0x98] sm:$0xf]
  %v73 = vld [vmem:[%s1 + $0x9c] sm:$0xf]
  %v74 = vld [vmem:[%s1 + $0xa0] sm:$0xf]
  %v75 = vld [vmem:[%s1 + $0xa4] sm:$0xf]
  %v76 = vld [vmem:[%s1 + $0xa8] sm:$0xf]
  %v77 = vld [vmem:[%s1 + $0xac] sm:$0xf]
  %v78 = vld [vmem:[%s1 + $0xb0] sm:$0xf]
  %v79 = vld [vmem:[%s1 + $0xb4] sm:$0xf]
  %v80 = vld [vmem:[%s1 + $0xb8] sm:$0xf]
  %v81 = vld [vmem:[%s1 + $0xbc] sm:$0xf]
  %v82 = vld [vmem:[%s1 + $0xc0] sm:$0xf]
  %v83 = vld [vmem:[%s1 + $0xc4] sm:$0xf]
  %v84 = vld [vmem:[%s1 + $0xc8] sm:$0xf]
  %v85 = vld [vmem:[%s1 + $0xcc] sm:$0xf]
  %v86 = vld [vmem:[%s1 + $0xd0] sm:$0xf]
  %v87 = vld [vmem:[%s1 + $0xd4] sm:$0xf]
  %v88 = vld [vmem:[%s1 + $0xd8] sm:$0xf]
  %v89 = vld [vmem:[%s1 + $0xdc] sm:$0xf]
  %v90 = vld [vmem:[%s1 + $0xe0] sm:$0xf]
  %v91 = vld [vmem:[%s1 + $0xe4] sm:$0xf]
  %v92 = vld [vmem:[%s1 + $0xe8] sm:$0xf]
  %v93 = vld [vmem:[%s1 + $0xec] sm:$0xf]
  %v94 = vld [vmem:[%s1 + $0xf0] sm:$0xf]
  %v95 = vld [vmem:[%s1 + $0xf4] sm:$0xf]
  %v96 = vld [vmem:[%s1 + $0xf8] sm:$0xf]
  %v97 = vld [vmem:[%s1 + $0xfc] sm:$0xf]
  %v114 = vunpack.c.l.b16 %v18
  %v115 = vunpack.c.h.b16 %v18
  %v116 = vunpack.c.l.b16 %v19
  %v117 = vunpack.c.h.b16 %v19
  %v118 = vunpack.c.l.b16 %v20
  %v119 = vunpack.c.h.b16 %v20
  %v120 = vunpack.c.l.b16 %v21
  %v121 = vunpack.c.h.b16 %v21
  %v122 = vunpack.c.l.b16 %v22
  %v123 = vunpack.c.h.b16 %v22
  %v124 = vunpack.c.l.b16 %v23
  %v125 = vunpack.c.h.b16 %v23
  %v126 = vunpack.c.l.b16 %v24
  %v127 = vunpack.c.h.b16 %v24
  %v128 = vunpack.c.l.b16 %v25
  %v129 = vunpack.c.h.b16 %v25
  %v130 = vunpack.c.l.b16 %v26
  %v131 = vunpack.c.h.b16 %v26
  %v132 = vunpack.c.l.b16 %v27
  %v133 = vunpack.c.h.b16 %v27
  %v134 = vunpack.c.l.b16 %v28
  %v135 = vunpack.c.h.b16 %v28
  %v136 = vunpack.c.l.b16 %v29
  %v137 = vunpack.c.h.b16 %v29
  %v138 = vunpack.c.l.b16 %v30
  %v139 = vunpack.c.h.b16 %v30
  %v140 = vunpack.c.l.b16 %v31
  %v141 = vunpack.c.h.b16 %v31
  %v142 = vunpack.c.l.b16 %v32
  %v143 = vunpack.c.h.b16 %v32
  %v144 = vunpack.c.l.b16 %v33
  %v145 = vunpack.c.h.b16 %v33
  %v146 = vpack.c.b16 %v118, %v114
  %v147 = vpack.c.b16 %v119, %v115
  %v148 = vpack.c.b16 %v120, %v116
  %v149 = vpack.c.b16 %v121, %v117
  %v150 = vpack.c.b16 %v126, %v122
  %v151 = vpack.c.b16 %v127, %v123
  %v152 = vpack.c.b16 %v128, %v124
  %v153 = vpack.c.b16 %v129, %v125
  %v154 = vpack.c.b16 %v134, %v130
  %v155 = vpack.c.b16 %v135, %v131
  %v156 = vpack.c.b16 %v136, %v132
  %v157 = vpack.c.b16 %v137, %v133
  %v158 = vpack.c.b16 %v142, %v138
  %v159 = vpack.c.b16 %v143, %v139
  %v160 = vpack.c.b16 %v144, %v140
  %v161 = vpack.c.b16 %v145, %v141
  %v242 = vunpack.c.l.b16 %v34
  %v243 = vunpack.c.l.b16 %v35
  %v244 = vunpack.c.l.b16 %v36
  %v245 = vunpack.c.l.b16 %v37
  %v246 = vunpack.c.l.b16 %v38
  %v247 = vunpack.c.l.b16 %v39
  %v248 = vunpack.c.l.b16 %v40
  %v249 = vunpack.c.l.b16 %v41
  %v250 = vunpack.c.l.b16 %v42
  %v251 = vunpack.c.l.b16 %v43
  %v252 = vunpack.c.l.b16 %v44
  %v253 = vunpack.c.l.b16 %v45
  %v254 = vunpack.c.l.b16 %v46
  %v255 = vunpack.c.l.b16 %v47
  %v256 = vunpack.c.l.b16 %v48
  %v257 = vunpack.c.l.b16 %v49
  %v258 = vunpack.c.l.b16 %v50
  %v259 = vunpack.c.l.b16 %v51
  %v260 = vunpack.c.l.b16 %v52
  %v261 = vunpack.c.l.b16 %v53
  %v262 = vunpack.c.l.b16 %v54
  %v263 = vunpack.c.l.b16 %v55
  %v264 = vunpack.c.l.b16 %v56
  %v265 = vunpack.c.l.b16 %v57
  %v266 = vunpack.c.l.b16 %v58
  %v267 = vunpack.c.l.b16 %v59
  %v268 = vunpack.c.l.b16 %v60
  %v269 = vunpack.c.l.b16 %v61
  %v270 = vunpack.c.l.b16 %v62
  %v271 = vunpack.c.l.b16 %v63
  %v272 = vunpack.c.l.b16 %v64
  %v273 = vunpack.c.l.b16 %v65
  %v274 = vunpack.c.l.b16 %v66
  %v275 = vunpack.c.l.b16 %v67
  %v276 = vunpack.c.l.b16 %v68
  %v277 = vunpack.c.l.b16 %v69
  %v278 = vunpack.c.l.b16 %v70
  %v279 = vunpack.c.l.b16 %v71
  %v280 = vunpack.c.l.b16 %v72
  %v281 = vunpack.c.l.b16 %v73
  %v282 = vunpack.c.l.b16 %v74
  %v283 = vunpack.c.l.b16 %v75
  %v284 = vunpack.c.l.b16 %v76
  %v285 = vunpack.c.l.b16 %v77
  %v286 = vunpack.c.l.b16 %v78
  %v287 = vunpack.c.l.b16 %v79
  %v288 = vunpack.c.l.b16 %v80
  %v289 = vunpack.c.l.b16 %v81
  %v290 = vunpack.c.l.b16 %v82
  %v291 = vunpack.c.l.b16 %v83
  %v292 = vunpack.c.l.b16 %v84
  %v293 = vunpack.c.l.b16 %v85
  %v294 = vunpack.c.l.b16 %v86
  %v295 = vunpack.c.l.b16 %v87
  %v296 = vunpack.c.l.b16 %v88
  %v297 = vunpack.c.l.b16 %v89
  %v298 = vunpack.c.l.b16 %v90
  %v299 = vunpack.c.l.b16 %v91
  %v300 = vunpack.c.l.b16 %v92
  %v301 = vunpack.c.l.b16 %v93
  %v302 = vunpack.c.l.b16 %v94
  %v303 = vunpack.c.l.b16 %v95
  %v304 = vunpack.c.l.b16 %v96
  %v305 = vunpack.c.l.b16 %v97
  %v306 = vpack.c.b16 %v243, %v242
  %v307 = vpack.c.b16 %v245, %v244
  %v308 = vpack.c.b16 %v247, %v246
  %v309 = vpack.c.b16 %v249, %v248
  %v310 = vpack.c.b16 %v251, %v250
  %v311 = vpack.c.b16 %v253, %v252
  %v312 = vpack.c.b16 %v255, %v254
  %v313 = vpack.c.b16 %v257, %v256
  %v314 = vpack.c.b16 %v259, %v258
  %v315 = vpack.c.b16 %v261, %v260
  %v316 = vpack.c.b16 %v263, %v262
  %v317 = vpack.c.b16 %v265, %v264
  %v318 = vpack.c.b16 %v267, %v266
  %v319 = vpack.c.b16 %v269, %v268
  %v320 = vpack.c.b16 %v271, %v270
  %v321 = vpack.c.b16 %v273, %v272
  %v322 = vpack.c.b16 %v275, %v274
  %v323 = vpack.c.b16 %v277, %v276
  %v324 = vpack.c.b16 %v279, %v278
  %v325 = vpack.c.b16 %v281, %v280
  %v326 = vpack.c.b16 %v283, %v282
  %v327 = vpack.c.b16 %v285, %v284
  %v328 = vpack.c.b16 %v287, %v286
  %v329 = vpack.c.b16 %v289, %v288
  %v330 = vpack.c.b16 %v291, %v290
  %v331 = vpack.c.b16 %v293, %v292
  %v332 = vpack.c.b16 %v295, %v294
  %v333 = vpack.c.b16 %v297, %v296
  %v334 = vpack.c.b16 %v299, %v298
  %v335 = vpack.c.b16 %v301, %v300
  %v336 = vpack.c.b16 %v303, %v302
  %v337 = vpack.c.b16 %v305, %v304
  %370 = vmatprep.subr.bf16.mxu0 0
  %371 = vmatpush1.bf16.msra.mxu0 %v306
  %372 = vmatprep.subr.bf16.mxu0 0
  %373 = vmatpush1.bf16.msra.mxu0 %v307
  %374 = vmatprep.subr.bf16.mxu0 0
  %375 = vmatpush1.bf16.msra.mxu0 %v308
  %376 = vmatprep.subr.bf16.mxu0 0
  %377 = vmatpush1.bf16.msra.mxu0 %v309
  %378 = vmatprep.subr.bf16.mxu0 0
  %379 = vmatpush1.bf16.msra.mxu0 %v310
  %380 = vmatprep.subr.bf16.mxu0 0
  %381 = vmatpush1.bf16.msra.mxu0 %v311
  %382 = vmatprep.subr.bf16.mxu0 0
  %383 = vmatpush1.bf16.msra.mxu0 %v312
  %384 = vmatprep.subr.bf16.mxu0 0
  %385 = vmatpush1.bf16.msra.mxu0 %v313
  %386 = vmatprep.subr.bf16.mxu0 0
  %387 = vmatpush1.bf16.msra.mxu0 %v314
  %388 = vmatprep.subr.bf16.mxu0 0
  %389 = vmatpush1.bf16.msra.mxu0 %v315
  %390 = vmatprep.subr.bf16.mxu0 0
  %391 = vmatpush1.bf16.msra.mxu0 %v316
  %392 = vmatprep.subr.bf16.mxu0 0
  %393 = vmatpush1.bf16.msra.mxu0 %v317
  %394 = vmatprep.subr.bf16.mxu0 0
  %395 = vmatpush1.bf16.msra.mxu0 %v318
  %396 = vmatprep.subr.bf16.mxu0 0
  %397 = vmatpush1.bf16.msra.mxu0 %v319
  %398 = vmatprep.subr.bf16.mxu0 0
  %399 = vmatpush1.bf16.msra.mxu0 %v320
  %400 = vmatprep.subr.bf16.mxu0 0
  %401 = vmatpush1.bf16.msra.mxu0 %v321
  %402 = vmatprep.mubr.bf16.mxu0 %v147
  %403 = vmatmul.mubr.bf16.gmra.mrb[0].mxu0 %v146
  %v404 = vpop.f32.mrb[0].mxu0
  %v405 = vadd.f32 0.0, %v404
  %v406 = vpop.f32.mrb[0].mxu0
  %v407 = vpop.f32.mrb[0].mxu0
  %v408 = vadd.f32 0.0, %v407
  %v409 = vpop.f32.mrb[0].mxu0
  %410 = vmatprep.mubr.bf16.mxu0 %v151
  %411 = vmatmul.mubr.bf16.gmra.mrb[0].mxu0 %v150
  %v412 = vpop.f32.mrb[0].mxu0
  %v413 = vadd.f32 0.0, %v412
  %v414 = vpop.f32.mrb[0].mxu0
  %v415 = vpop.f32.mrb[0].mxu0
  %v416 = vadd.f32 0.0, %v415
  %v417 = vpop.f32.mrb[0].mxu0
  %418 = vmatprep.mubr.bf16.mxu0 %v155
  %419 = vmatmul.mubr.bf16.gmra.mrb[0].mxu0 %v154
  %v420 = vpop.f32.mrb[0].mxu0
  %v421 = vadd.f32 0.0, %v420
  %v422 = vpop.f32.mrb[0].mxu0
  %v423 = vpop.f32.mrb[0].mxu0
  %v424 = vadd.f32 0.0, %v423
  %v425 = vpop.f32.mrb[0].mxu0
  %426 = vmatprep.mubr.bf16.mxu0 %v159
  %427 = vmatmul.mubr.bf16.gmra.mrb[0].mxu0 %v158
  %v428 = vpop.f32.mrb[0].mxu0
  %v429 = vadd.f32 0.0, %v428
  %v430 = vpop.f32.mrb[0].mxu0
  %v431 = vpop.f32.mrb[0].mxu0
  %v432 = vadd.f32 0.0, %v431
  %v433 = vpop.f32.mrb[0].mxu0
  %434 = vdwg.mxu0
  %435 = vmatprep.subr.bf16.mxu0 0
  %436 = vmatpush1.bf16.msra.mxu0 %v322
  %437 = vmatprep.subr.bf16.mxu0 0
  %438 = vmatpush1.bf16.msra.mxu0 %v323
  %439 = vmatprep.subr.bf16.mxu0 0
  %440 = vmatpush1.bf16.msra.mxu0 %v324
  %441 = vmatprep.subr.bf16.mxu0 0
  %442 = vmatpush1.bf16.msra.mxu0 %v325
  %443 = vmatprep.subr.bf16.mxu0 0
  %444 = vmatpush1.bf16.msra.mxu0 %v326
  %445 = vmatprep.subr.bf16.mxu0 0
  %446 = vmatpush1.bf16.msra.mxu0 %v327
  %447 = vmatprep.subr.bf16.mxu0 0
  %448 = vmatpush1.bf16.msra.mxu0 %v328
  %449 = vmatprep.subr.bf16.mxu0 0
  %450 = vmatpush1.bf16.msra.mxu0 %v329
  %451 = vmatprep.subr.bf16.mxu0 0
  %452 = vmatpush1.bf16.msra.mxu0 %v330
  %453 = vmatprep.subr.bf16.mxu0 0
  %454 = vmatpush1.bf16.msra.mxu0 %v331
  %455 = vmatprep.subr.bf16.mxu0 0
  %456 = vmatpush1.bf16.msra.mxu0 %v332
  %457 = vmatprep.subr.bf16.mxu0 0
  %458 = vmatpush1.bf16.msra.mxu0 %v333
  %459 = vmatprep.subr.bf16.mxu0 0
  %460 = vmatpush1.bf16.msra.mxu0 %v334
  %461 = vmatprep.subr.bf16.mxu0 0
  %462 = vmatpush1.bf16.msra.mxu0 %v335
  %463 = vmatprep.subr.bf16.mxu0 0
  %464 = vmatpush1.bf16.msra.mxu0 %v336
  %465 = vmatprep.subr.bf16.mxu0 0
  %466 = vmatpush1.bf16.msra.mxu0 %v337
  %467 = vmatprep.mubr.bf16.mxu0 %v149
  %468 = vmatmul.mubr.bf16.gmra.mrb[0].mxu0 %v148
  %v469 = vpop.f32.mrb[0].mxu0
  %v470 = vadd.f32 %v405, %v469
  %v471 = vpop.f32.mrb[0].mxu0
  %v472 = vpop.f32.mrb[0].mxu0
  %v473 = vadd.f32 %v408, %v472
  %v474 = vpop.f32.mrb[0].mxu0
  %475 = vmatprep.mubr.bf16.mxu0 %v153
  %476 = vmatmul.mubr.bf16.gmra.mrb[0].mxu0 %v152
  %v477 = vpop.f32.mrb[0].mxu0
  %v478 = vadd.f32 %v413, %v477
  %v479 = vpop.f32.mrb[0].mxu0
  %v480 = vpop.f32.mrb[0].mxu0
  %v481 = vadd.f32 %v416, %v480
  %v482 = vpop.f32.mrb[0].mxu0
  %483 = vmatprep.mubr.bf16.mxu0 %v157
  %484 = vmatmul.mubr.bf16.gmra.mrb[0].mxu0 %v156
  %v485 = vpop.f32.mrb[0].mxu0
  %v486 = vadd.f32 %v421, %v485
  %v487 = vpop.f32.mrb[0].mxu0
  %v488 = vpop.f32.mrb[0].mxu0
  %v489 = vadd.f32 %v424, %v488
  %v490 = vpop.f32.mrb[0].mxu0
  %491 = vmatprep.mubr.bf16.mxu0 %v161
  %492 = vmatmul.mubr.bf16.gmra.mrb[0].mxu0 %v160
  %v493 = vpop.f32.mrb[0].mxu0
  %v494 = vadd.f32 %v429, %v493
  %v495 = vpop.f32.mrb[0].mxu0
  %v496 = vpop.f32.mrb[0].mxu0
  %v497 = vadd.f32 %v432, %v496
  %v498 = vpop.f32.mrb[0].mxu0
  %499 = vdwg.mxu0
  %v500 = vld [vmem:[%s2] sm:$0x1]
  %v502 = vlaneseq
  %v503 = vshrl.u32 %v502, 7
  %v504 = vsub.s32 0, %v503
  %v505 = vrot.slane %v500, %v504
  %v507 = vmul.f32 %v470, %v505
  %v508 = vmul.f32 %v473, %v505
  %v509 = vmul.f32 %v478, %v505
  %v510 = vmul.f32 %v481, %v505
  %v511 = vmul.f32 %v486, %v505
  %v512 = vmul.f32 %v489, %v505
  %v513 = vmul.f32 %v494, %v505
  %v514 = vmul.f32 %v497, %v505
  %v515 = vld [vmem:[%s3] sm:$0x1]
  %v517 = vlaneseq
  %v518 = vshrl.u32 %v517, 7
  %v519 = vsub.s32 0, %v518
  %v520 = vrot.slane %v515, %v519
  %v522 = vadd.f32 %v507, %v520
  %v523 = vadd.f32 %v508, %v520
  %v524 = vadd.f32 %v509, %v520
  %v525 = vadd.f32 %v510, %v520
  %v526 = vadd.f32 %v511, %v520
  %v527 = vadd.f32 %v512, %v520
  %v528 = vadd.f32 %v513, %v520
  %v529 = vadd.f32 %v514, %v520
  %v530 = vmax.f32 %v522, 0.0
  %v531 = vmax.f32 %v523, 0.0
  %v532 = vmax.f32 %v524, 0.0
  %v533 = vmax.f32 %v525, 0.0
  %v534 = vmax.f32 %v526, 0.0
  %v535 = vmax.f32 %v527, 0.0
  %v536 = vmax.f32 %v528, 0.0
  %v537 = vmax.f32 %v529, 0.0
  %v538 = vpack.c.bf16 %v531, %v530
  %v539 = vpack.c.bf16 %v533, %v532
  %v540 = vpack.c.bf16 %v535, %v534
  %v541 = vpack.c.bf16 %v537, %v536
  %v546 = vunpack.c.l.b16 %v538
  %v547 = vunpack.c.h.b16 %v538
  %v548 = vunpack.c.l.b16 %v539
  %v549 = vunpack.c.h.b16 %v539
  %v550 = vunpack.c.l.b16 %v540
  %v551 = vunpack.c.h.b16 %v540
  %v552 = vunpack.c.l.b16 %v541
  %v553 = vunpack.c.h.b16 %v541
  %v554 = vpack.c.b16 %v546, %v546
  %v555 = vpack.c.b16 %v547, %v547
  %v556 = vpack.c.b16 %v548, %v548
  %v557 = vpack.c.b16 %v549, %v549
  %v558 = vpack.c.b16 %v550, %v550
  %v559 = vpack.c.b16 %v551, %v551
  %v560 = vpack.c.b16 %v552, %v552
  %v561 = vpack.c.b16 %v553, %v553
  %570 = vst [vmem:[%s4] sm:$0xf] %v554
  %571 = vst [vmem:[%s4 + $0x4] sm:$0xf] %v555
  %572 = vst [vmem:[%s4 + $0x8] sm:$0xf] %v556
  %573 = vst [vmem:[%s4 + $0xc] sm:$0xf] %v557
  %574 = vst [vmem:[%s4 + $0x10] sm:$0xf] %v558
  %575 = vst [vmem:[%s4 + $0x14] sm:$0xf] %v559
  %576 = vst [vmem:[%s4 + $0x18] sm:$0xf] %v560
  %577 = vst [vmem:[%s4 + $0x1c] sm:$0xf] %v561
  // Predicated region
  $region18: #{medium_conv_forward.5} parent=0 // pred_check
    _
  $region19: #{medium_conv_forward.5} parent=0 // pred_check_branch
    %579 = sbr.rel (0) target = $region21
  $region20: #{medium_conv_forward.5} parent=0 // pred_region
    _
  $region21: #{medium_conv_forward.5} parent=0 // pred_fallthru
    _
  // Predicated region
  $region22: #{medium_conv_forward.5} parent=0 // pred_check
    _
  $region23: #{medium_conv_forward.5} parent=0 // pred_check_branch
    %581 = sbr.rel (0) target = $region25
  $region24: #{medium_conv_forward.5} parent=0 // pred_region
    _
  $region25: #{medium_conv_forward.5} parent=0 // pred_fallthru
    _

// kernel: medium_conv_forward.6
$region0: #{medium_conv_forward.6}
  #allocation0 [shape = 'u32[]', space=smem, size = 0x4, offset = 0x4, fixed_abs, tag = 'smem constant byte address 0x4 - core index']
  #allocation1 [shape = 'u32[144,128]{1,0:T(1,128)}', space=vmem, size = 0x12000, scoped, tag = 'internal scratch']
  %s0 = inlined_call_operand.vmem [shape: bf16[16,896], index: 0, kind: input, shape index: {}]
  %s1 = inlined_call_operand.vmem [shape: bf16[896,128], index: 1, kind: input, shape index: {}]
  %s2 = inlined_call_operand.vmem [shape: f32[1,128], index: 2, kind: input, shape index: {}]
  %s3 = inlined_call_operand.vmem [shape: f32[1,128], index: 3, kind: input, shape index: {}]
  %s4 = inlined_call_operand.vmem [shape: bf16[16,128], index: 4, kind: output, shape index: {}]
  %s5 = sld [smem:[#allocation0]]
  $region26: #{medium_conv_forward.6} parent=0
    _
  %s7 = ssub.s32 1, %s5
  %s8 = scalar_select 0, %s7, %s5
  // Predicated region
  $region2: #{medium_conv_forward.6} parent=0 // pred_check
    _
  $region3: #{medium_conv_forward.6} parent=0 // pred_check_branch
    %10 = sbr.rel (0) target = $region5
  $region4: #{medium_conv_forward.6} parent=0 // pred_region
    _
  $region5: #{medium_conv_forward.6} parent=0 // pred_fallthru
    _
  // Predicated region
  $region6: #{medium_conv_forward.6} parent=0 // pred_check
    _
  $region7: #{medium_conv_forward.6} parent=0 // pred_check_branch
    %12 = sbr.rel (0) target = $region9
  $region8: #{medium_conv_forward.6} parent=0 // pred_region
    _
  $region9: #{medium_conv_forward.6} parent=0 // pred_fallthru
    _
  // Predicated region
  $region10: #{medium_conv_forward.6} parent=0 // pred_check
    _
  $region11: #{medium_conv_forward.6} parent=0 // pred_check_branch
    %14 = sbr.rel (0) target = $region13
  $region12: #{medium_conv_forward.6} parent=0 // pred_region
    _
  $region13: #{medium_conv_forward.6} parent=0 // pred_fallthru
    _
  // Predicated region
  $region14: #{medium_conv_forward.6} parent=0 // pred_check
    _
  $region15: #{medium_conv_forward.6} parent=0 // pred_check_branch
    %16 = sbr.rel (0) target = $region17
  $region16: #{medium_conv_forward.6} parent=0 // pred_region
    _
  $region17: #{medium_conv_forward.6} parent=0 // pred_fallthru
    _
  %v18 = vld [vmem:[%s0] sm:$0xff]
  %v19 = vld [vmem:[%s0 + $0x8] sm:$0xff]
  %v20 = vld [vmem:[%s0 + $0x10] sm:$0xff]
  %v21 = vld [vmem:[%s0 + $0x18] sm:$0xf]
  %v22 = vld [vmem:[%s0 + $0x1c] sm:$0xff]
  %v23 = vld [vmem:[%s0 + $0x24] sm:$0xff]
  %v24 = vld [vmem:[%s0 + $0x2c] sm:$0xff]
  %v25 = vld [vmem:[%s0 + $0x34] sm:$0xf]
  %v26 = vld [vmem:[%s1] sm:$0xf]
  %v27 = vld [vmem:[%s1 + $0x4] sm:$0xf]
  %v28 = vld [vmem:[%s1 + $0x8] sm:$0xf]
  %v29 = vld [vmem:[%s1 + $0xc] sm:$0xf]
  %v30 = vld [vmem:[%s1 + $0x10] sm:$0xf]
  %v31 = vld [vmem:[%s1 + $0x14] sm:$0xf]
  %v32 = vld [vmem:[%s1 + $0x18] sm:$0xf]
  %v33 = vld [vmem:[%s1 + $0x1c] sm:$0xf]
  %v34 = vld [vmem:[%s1 + $0x20] sm:$0xf]
  %v35 = vld [vmem:[%s1 + $0x24] sm:$0xf]
  %v36 = vld [vmem:[%s1 + $0x28] sm:$0xf]
  %v37 = vld [vmem:[%s1 + $0x2c] sm:$0xf]
  %v38 = vld [vmem:[%s1 + $0x30] sm:$0xf]
  %v39 = vld [vmem:[%s1 + $0x34] sm:$0xf]
  %v40 = vld [vmem:[%s1 + $0x38] sm:$0xf]
  %v41 = vld [vmem:[%s1 + $0x3c] sm:$0xf]
  %v42 = vld [vmem:[%s1 + $0x40] sm:$0xf]
  %v43 = vld [vmem:[%s1 + $0x44] sm:$0xf]
  %v44 = vld [vmem:[%s1 + $0x48] sm:$0xf]
  %v45 = vld [vmem:[%s1 + $0x4c] sm:$0xf]
  %v46 = vld [vmem:[%s1 + $0x50] sm:$0xf]
  %v47 = vld [vmem:[%s1 + $0x54] sm:$0xf]
  %v48 = vld [vmem:[%s1 + $0x58] sm:$0xf]
  %v49 = vld [vmem:[%s1 + $0x5c] sm:$0xf]
  %v50 = vld [vmem:[%s1 + $0x60] sm:$0xf]
  %v51 = vld [vmem:[%s1 + $0x64] sm:$0xf]
  %v52 = vld [vmem:[%s1 + $0x68] sm:$0xf]
  %v53 = vld [vmem:[%s1 + $0x6c] sm:$0xf]
  %v54 = vld [vmem:[%s1 + $0x70] sm:$0xf]
  %v55 = vld [vmem:[%s1 + $0x74] sm:$0xf]
  %v56 = vld [vmem:[%s1 + $0x78] sm:$0xf]
  %v57 = vld [vmem:[%s1 + $0x7c] sm:$0xf]
  %v58 = vld [vmem:[%s1 + $0x80] sm:$0xf]
  %v59 = vld [vmem:[%s1 + $0x84] sm:$0xf]
  %v60 = vld [vmem:[%s1 + $0x88] sm:$0xf]
  %v61 = vld [vmem:[%s1 + $0x8c] sm:$0xf]
  %v62 = vld [vmem:[%s1 + $0x90] sm:$0xf]
  %v63 = vld [vmem:[%s1 + $0x94] sm:$0xf]
  %v64 = vld [vmem:[%s1 + $0x98] sm:$0xf]
  %v65 = vld [vmem:[%s1 + $0x9c] sm:$0xf]
  %v66 = vld [vmem:[%s1 + $0xa0] sm:$0xf]
  %v67 = vld [vmem:[%s1 + $0xa4] sm:$0xf]
  %v68 = vld [vmem:[%s1 + $0xa8] sm:$0xf]
  %v69 = vld [vmem:[%s1 + $0xac] sm:$0xf]
  %v70 = vld [vmem:[%s1 + $0xb0] sm:$0xf]
  %v71 = vld [vmem:[%s1 + $0xb4] sm:$0xf]
  %v72 = vld [vmem:[%s1 + $0xb8] sm:$0xf]
  %v73 = vld [vmem:[%s1 + $0xbc] sm:$0xf]
  %v74 = vld [vmem:[%s1 + $0xc0] sm:$0xf]
  %v75 = vld [vmem:[%s1 + $0xc4] sm:$0xf]
  %v76 = vld [vmem:[%s1 + $0xc8] sm:$0xf]
  %v77 = vld [vmem:[%s1 + $0xcc] sm:$0xf]
  %v78 = vld [vmem:[%s1 + $0xd0] sm:$0xf]
  %v79 = vld [vmem:[%s1 + $0xd4] sm:$0xf]
  %v80 = vld [vmem:[%s1 + $0xd8] sm:$0xf]
  %v81 = vld [vmem:[%s1 + $0xdc] sm:$0xf]
  %v82 = vld [vmem:[%s1 + $0xe0] sm:$0xf]
  %v83 = vld [vmem:[%s1 + $0xe4] sm:$0xf]
  %v84 = vld [vmem:[%s1 + $0xe8] sm:$0xf]
  %v85 = vld [vmem:[%s1 + $0xec] sm:$0xf]
  %v86 = vld [vmem:[%s1 + $0xf0] sm:$0xf]
  %v87 = vld [vmem:[%s1 + $0xf4] sm:$0xf]
  %v88 = vld [vmem:[%s1 + $0xf8] sm:$0xf]
  %v89 = vld [vmem:[%s1 + $0xfc] sm:$0xf]
  %v90 = vld [vmem:[%s1 + $0x100] sm:$0xf]
  %v91 = vld [vmem:[%s1 + $0x104] sm:$0xf]
  %v92 = vld [vmem:[%s1 + $0x108] sm:$0xf]
  %v93 = vld [vmem:[%s1 + $0x10c] sm:$0xf]
  %v94 = vld [vmem:[%s1 + $0x110] sm:$0xf]
  %v95 = vld [vmem:[%s1 + $0x114] sm:$0xf]
  %v96 = vld [vmem:[%s1 + $0x118] sm:$0xf]
  %v97 = vld [vmem:[%s1 + $0x11c] sm:$0xf]
  %v98 = vld [vmem:[%s1 + $0x120] sm:$0xf]
  %v99 = vld [vmem:[%s1 + $0x124] sm:$0xf]
  %v100 = vld [vmem:[%s1 + $0x128] sm:$0xf]
  %v101 = vld [vmem:[%s1 + $0x12c] sm:$0xf]
  %v102 = vld [vmem:[%s1 + $0x130] sm:$0xf]
  %v103 = vld [vmem:[%s1 + $0x134] sm:$0xf]
  %v104 = vld [vmem:[%s1 + $0x138] sm:$0xf]
  %v105 = vld [vmem:[%s1 + $0x13c] sm:$0xf]
  %v106 = vld [vmem:[%s1 + $0x140] sm:$0xf]
  %v107 = vld [vmem:[%s1 + $0x144] sm:$0xf]
  %v108 = vld [vmem:[%s1 + $0x148] sm:$0xf]
  %v109 = vld [vmem:[%s1 + $0x14c] sm:$0xf]
  %v110 = vld [vmem:[%s1 + $0x150] sm:$0xf]
  %v111 = vld [vmem:[%s1 + $0x154] sm:$0xf]
  %v112 = vld [vmem:[%s1 + $0x158] sm:$0xf]
  %v113 = vld [vmem:[%s1 + $0x15c] sm:$0xf]
  %v114 = vld [vmem:[%s1 + $0x160] sm:$0xf]
  %v115 = vld [vmem:[%s1 + $0x164] sm:$0xf]
  %v116 = vld [vmem:[%s1 + $0x168] sm:$0xf]
  %v117 = vld [vmem:[%s1 + $0x16c] sm:$0xf]
  %v118 = vld [vmem:[%s1 + $0x170] sm:$0xf]
  %v119 = vld [vmem:[%s1 + $0x174] sm:$0xf]
  %v120 = vld [vmem:[%s1 + $0x178] sm:$0xf]
  %v121 = vld [vmem:[%s1 + $0x17c] sm:$0xf]
  %v122 = vld [vmem:[%s1 + $0x180] sm:$0xf]
  %v123 = vld [vmem:[%s1 + $0x184] sm:$0xf]
  %v124 = vld [vmem:[%s1 + $0x188] sm:$0xf]
  %v125 = vld [vmem:[%s1 + $0x18c] sm:$0xf]
  %v126 = vld [vmem:[%s1 + $0x190] sm:$0xf]
  %v127 = vld [vmem:[%s1 + $0x194] sm:$0xf]
  %v128 = vld [vmem:[%s1 + $0x198] sm:$0xf]
  %v129 = vld [vmem:[%s1 + $0x19c] sm:$0xf]
  %v130 = vld [vmem:[%s1 + $0x1a0] sm:$0xf]
  %v131 = vld [vmem:[%s1 + $0x1a4] sm:$0xf]
  %v132 = vld [vmem:[%s1 + $0x1a8] sm:$0xf]
  %v133 = vld [vmem:[%s1 + $0x1ac] sm:$0xf]
  %v134 = vld [vmem:[%s1 + $0x1b0] sm:$0xf]
  %v135 = vld [vmem:[%s1 + $0x1b4] sm:$0xf]
  %v136 = vld [vmem:[%s1 + $0x1b8] sm:$0xf]
  %v137 = vld [vmem:[%s1 + $0x1bc] sm:$0xf]
  %v146 = vunpack.c.l.b16 %v18
  %v147 = vunpack.c.h.b16 %v18
  %v148 = vunpack.c.l.b16 %v19
  %v149 = vunpack.c.h.b16 %v19
  %v150 = vunpack.c.l.b16 %v20
  %v151 = vunpack.c.h.b16 %v20
  %v152 = vunpack.c.l.b16 %v21
  %v153 = vunpack.c.l.b16 %v22
  %v154 = vunpack.c.h.b16 %v22
  %v155 = vunpack.c.l.b16 %v23
  %v156 = vunpack.c.h.b16 %v23
  %v157 = vunpack.c.l.b16 %v24
  %v158 = vunpack.c.h.b16 %v24
  %v159 = vunpack.c.l.b16 %v25
  %v160 = vpack.c.b16 %v153, %v146
  %v161 = vpack.c.b16 %v154, %v147
  %v162 = vpack.c.b16 %v155, %v148
  %v163 = vpack.c.b16 %v156, %v149
  %v164 = vpack.c.b16 %v157, %v150
  %v165 = vpack.c.b16 %v158, %v151
  %v166 = vpack.c.b16 %v159, %v152
  %v286 = vunpack.c.l.b16 %v26
  %v287 = vunpack.c.l.b16 %v27
  %v288 = vunpack.c.l.b16 %v28
  %v289 = vunpack.c.l.b16 %v29
  %v290 = vunpack.c.l.b16 %v30
  %v291 = vunpack.c.l.b16 %v31
  %v292 = vunpack.c.l.b16 %v32
  %v293 = vunpack.c.l.b16 %v33
  %v294 = vunpack.c.l.b16 %v34
  %v295 = vunpack.c.l.b16 %v35
  %v296 = vunpack.c.l.b16 %v36
  %v297 = vunpack.c.l.b16 %v37
  %v298 = vunpack.c.l.b16 %v38
  %v299 = vunpack.c.l.b16 %v39
  %v300 = vunpack.c.l.b16 %v40
  %v301 = vunpack.c.l.b16 %v41
  %v302 = vunpack.c.l.b16 %v42
  %v303 = vunpack.c.l.b16 %v43
  %v304 = vunpack.c.l.b16 %v44
  %v305 = vunpack.c.l.b16 %v45
  %v306 = vunpack.c.l.b16 %v46
  %v307 = vunpack.c.l.b16 %v47
  %v308 = vunpack.c.l.b16 %v48
  %v309 = vunpack.c.l.b16 %v49
  %v310 = vunpack.c.l.b16 %v50
  %v311 = vunpack.c.l.b16 %v51
  %v312 = vunpack.c.l.b16 %v52
  %v313 = vunpack.c.l.b16 %v53
  %v314 = vunpack.c.l.b16 %v54
  %v315 = vunpack.c.l.b16 %v55
  %v316 = vunpack.c.l.b16 %v56
  %v317 = vunpack.c.l.b16 %v57
  %v318 = vunpack.c.l.b16 %v58
  %v319 = vunpack.c.l.b16 %v59
  %v320 = vunpack.c.l.b16 %v60
  %v321 = vunpack.c.l.b16 %v61
  %v322 = vunpack.c.l.b16 %v62
  %v323 = vunpack.c.l.b16 %v63
  %v324 = vunpack.c.l.b16 %v64
  %v325 = vunpack.c.l.b16 %v65
  %v326 = vunpack.c.l.b16 %v66
  %v327 = vunpack.c.l.b16 %v67
  %v328 = vunpack.c.l.b16 %v68
  %v329 = vunpack.c.l.b16 %v69
  %v330 = vunpack.c.l.b16 %v70
  %v331 = vunpack.c.l.b16 %v71
  %v332 = vunpack.c.l.b16 %v72
  %v333 = vunpack.c.l.b16 %v73
  %v334 = vunpack.c.l.b16 %v74
  %v335 = vunpack.c.l.b16 %v75
  %v336 = vunpack.c.l.b16 %v76
  %v337 = vunpack.c.l.b16 %v77
  %v338 = vunpack.c.l.b16 %v78
  %v339 = vunpack.c.l.b16 %v79
  %v340 = vunpack.c.l.b16 %v80
  %v341 = vunpack.c.l.b16 %v81
  %v342 = vunpack.c.l.b16 %v82
  %v343 = vunpack.c.l.b16 %v83
  %v344 = vunpack.c.l.b16 %v84
  %v345 = vunpack.c.l.b16 %v85
  %v346 = vunpack.c.l.b16 %v86
  %v347 = vunpack.c.l.b16 %v87
  %v348 = vunpack.c.l.b16 %v88
  %v349 = vunpack.c.l.b16 %v89
  %v350 = vunpack.c.l.b16 %v90
  %v351 = vunpack.c.l.b16 %v91
  %v352 = vunpack.c.l.b16 %v92
  %v353 = vunpack.c.l.b16 %v93
  %v354 = vunpack.c.l.b16 %v94
  %v355 = vunpack.c.l.b16 %v95
  %v356 = vunpack.c.l.b16 %v96
  %v357 = vunpack.c.l.b16 %v97
  %v358 = vunpack.c.l.b16 %v98
  %v359 = vunpack.c.l.b16 %v99
  %v360 = vunpack.c.l.b16 %v100
  %v361 = vunpack.c.l.b16 %v101
  %v362 = vunpack.c.l.b16 %v102
  %v363 = vunpack.c.l.b16 %v103
  %v364 = vunpack.c.l.b16 %v104
  %v365 = vunpack.c.l.b16 %v105
  %v366 = vunpack.c.l.b16 %v106
  %v367 = vunpack.c.l.b16 %v107
  %v368 = vunpack.c.l.b16 %v108
  %v369 = vunpack.c.l.b16 %v109
  %v370 = vunpack.c.l.b16 %v110
  %v371 = vunpack.c.l.b16 %v111
  %v372 = vunpack.c.l.b16 %v112
  %v373 = vunpack.c.l.b16 %v113
  %v374 = vunpack.c.l.b16 %v114
  %v375 = vunpack.c.l.b16 %v115
  %v376 = vunpack.c.l.b16 %v116
  %v377 = vunpack.c.l.b16 %v117
  %v378 = vunpack.c.l.b16 %v118
  %v379 = vunpack.c.l.b16 %v119
  %v380 = vunpack.c.l.b16 %v120
  %v381 = vunpack.c.l.b16 %v121
  %v382 = vunpack.c.l.b16 %v122
  %v383 = vunpack.c.l.b16 %v123
  %v384 = vunpack.c.l.b16 %v124
  %v385 = vunpack.c.l.b16 %v125
  %v386 = vunpack.c.l.b16 %v126
  %v387 = vunpack.c.l.b16 %v127
  %v388 = vunpack.c.l.b16 %v128
  %v389 = vunpack.c.l.b16 %v129
  %v390 = vunpack.c.l.b16 %v130
  %v391 = vunpack.c.l.b16 %v131
  %v392 = vunpack.c.l.b16 %v132
  %v393 = vunpack.c.l.b16 %v133
  %v394 = vunpack.c.l.b16 %v134
  %v395 = vunpack.c.l.b16 %v135
  %v396 = vunpack.c.l.b16 %v136
  %v397 = vunpack.c.l.b16 %v137
  %v398 = vpack.c.b16 %v287, %v286
  %v399 = vpack.c.b16 %v289, %v288
  %v400 = vpack.c.b16 %v291, %v290
  %v401 = vpack.c.b16 %v293, %v292
  %v402 = vpack.c.b16 %v295, %v294
  %v403 = vpack.c.b16 %v297, %v296
  %v404 = vpack.c.b16 %v299, %v298
  %v405 = vpack.c.b16 %v301, %v300
  %v406 = vpack.c.b16 %v303, %v302
  %v407 = vpack.c.b16 %v305, %v304
  %v408 = vpack.c.b16 %v307, %v306
  %v409 = vpack.c.b16 %v309, %v308
  %v410 = vpack.c.b16 %v311, %v310
  %v411 = vpack.c.b16 %v313, %v312
  %v412 = vpack.c.b16 %v315, %v314
  %v413 = vpack.c.b16 %v317, %v316
  %v414 = vpack.c.b16 %v319, %v318
  %v415 = vpack.c.b16 %v321, %v320
  %v416 = vpack.c.b16 %v323, %v322
  %v417 = vpack.c.b16 %v325, %v324
  %v418 = vpack.c.b16 %v327, %v326
  %v419 = vpack.c.b16 %v329, %v328
  %v420 = vpack.c.b16 %v331, %v330
  %v421 = vpack.c.b16 %v333, %v332
  %v422 = vpack.c.b16 %v335, %v334
  %v423 = vpack.c.b16 %v337, %v336
  %v424 = vpack.c.b16 %v339, %v338
  %v425 = vpack.c.b16 %v341, %v340
  %v426 = vpack.c.b16 %v343, %v342
  %v427 = vpack.c.b16 %v345, %v344
  %v428 = vpack.c.b16 %v347, %v346
  %v429 = vpack.c.b16 %v349, %v348
  %v430 = vpack.c.b16 %v351, %v350
  %v431 = vpack.c.b16 %v353, %v352
  %v432 = vpack.c.b16 %v355, %v354
  %v433 = vpack.c.b16 %v357, %v356
  %v434 = vpack.c.b16 %v359, %v358
  %v435 = vpack.c.b16 %v361, %v360
  %v436 = vpack.c.b16 %v363, %v362
  %v437 = vpack.c.b16 %v365, %v364
  %v438 = vpack.c.b16 %v367, %v366
  %v439 = vpack.c.b16 %v369, %v368
  %v440 = vpack.c.b16 %v371, %v370
  %v441 = vpack.c.b16 %v373, %v372
  %v442 = vpack.c.b16 %v375, %v374
  %v443 = vpack.c.b16 %v377, %v376
  %v444 = vpack.c.b16 %v379, %v378
  %v445 = vpack.c.b16 %v381, %v380
  %v446 = vpack.c.b16 %v383, %v382
  %v447 = vpack.c.b16 %v385, %v384
  %v448 = vpack.c.b16 %v387, %v386
  %v449 = vpack.c.b16 %v389, %v388
  %v450 = vpack.c.b16 %v391, %v390
  %v451 = vpack.c.b16 %v393, %v392
  %v452 = vpack.c.b16 %v395, %v394
  %v453 = vpack.c.b16 %v397, %v396
  %510 = vmatprep.subr.bf16.mxu0 0
  %511 = vmatpush1.bf16.msra.mxu0 %v398
  %512 = vmatprep.subr.bf16.mxu0 0
  %513 = vmatpush1.bf16.msra.mxu0 %v399
  %514 = vmatprep.subr.bf16.mxu0 0
  %515 = vmatpush1.bf16.msra.mxu0 %v400
  %516 = vmatprep.subr.bf16.mxu0 0
  %517 = vmatpush1.bf16.msra.mxu0 %v401
  %518 = vmatprep.subr.bf16.mxu0 0
  %519 = vmatpush1.bf16.msra.mxu0 %v402
  %520 = vmatprep.subr.bf16.mxu0 0
  %521 = vmatpush1.bf16.msra.mxu0 %v403
  %522 = vmatprep.subr.bf16.mxu0 0
  %523 = vmatpush1.bf16.msra.mxu0 %v404
  %524 = vmatprep.subr.bf16.mxu0 0
  %525 = vmatpush1.bf16.msra.mxu0 %v405
  %526 = vmatprep.subr.bf16.mxu0 0
  %527 = vmatpush1.bf16.msra.mxu0 %v406
  %528 = vmatprep.subr.bf16.mxu0 0
  %529 = vmatpush1.bf16.msra.mxu0 %v407
  %530 = vmatprep.subr.bf16.mxu0 0
  %531 = vmatpush1.bf16.msra.mxu0 %v408
  %532 = vmatprep.subr.bf16.mxu0 0
  %533 = vmatpush1.bf16.msra.mxu0 %v409
  %534 = vmatprep.subr.bf16.mxu0 0
  %535 = vmatpush1.bf16.msra.mxu0 %v410
  %536 = vmatprep.subr.bf16.mxu0 0
  %537 = vmatpush1.bf16.msra.mxu0 %v411
  %538 = vmatprep.subr.bf16.mxu0 0
  %539 = vmatpush1.bf16.msra.mxu0 %v412
  %540 = vmatprep.subr.bf16.mxu0 0
  %541 = vmatpush1.bf16.msra.mxu0 %v413
  %542 = vmatprep.mubr.bf16.mxu0 %v161
  %543 = vmatmul.mubr.bf16.gmra.mrb[0].mxu0 %v160
  %v544 = vpop.f32.mrb[0].mxu0
  %v545 = vadd.f32 0.0, %v544
  %v546 = vpop.f32.mrb[0].mxu0
  %v547 = vpop.f32.mrb[0].mxu0
  %v548 = vadd.f32 0.0, %v547
  %v549 = vpop.f32.mrb[0].mxu0
  %550 = vdwg.mxu0
  %551 = vmatprep.subr.bf16.mxu0 0
  %552 = vmatpush1.bf16.msra.mxu0 %v414
  %553 = vmatprep.subr.bf16.mxu0 0
  %554 = vmatpush1.bf16.msra.mxu0 %v415
  %555 = vmatprep.subr.bf16.mxu0 0
  %556 = vmatpush1.bf16.msra.mxu0 %v416
  %557 = vmatprep.subr.bf16.mxu0 0
  %558 = vmatpush1.bf16.msra.mxu0 %v417
  %559 = vmatprep.subr.bf16.mxu0 0
  %560 = vmatpush1.bf16.msra.mxu0 %v418
  %561 = vmatprep.subr.bf16.mxu0 0
  %562 = vmatpush1.bf16.msra.mxu0 %v419
  %563 = vmatprep.subr.bf16.mxu0 0
  %564 = vmatpush1.bf16.msra.mxu0 %v420
  %565 = vmatprep.subr.bf16.mxu0 0
  %566 = vmatpush1.bf16.msra.mxu0 %v421
  %567 = vmatprep.subr.bf16.mxu0 0
  %568 = vmatpush1.bf16.msra.mxu0 %v422
  %569 = vmatprep.subr.bf16.mxu0 0
  %570 = vmatpush1.bf16.msra.mxu0 %v423
  %571 = vmatprep.subr.bf16.mxu0 0
  %572 = vmatpush1.bf16.msra.mxu0 %v424
  %573 = vmatprep.subr.bf16.mxu0 0
  %574 = vmatpush1.bf16.msra.mxu0 %v425
  %575 = vmatprep.subr.bf16.mxu0 0
  %576 = vmatpush1.bf16.msra.mxu0 %v426
  %577 = vmatprep.subr.bf16.mxu0 0
  %578 = vmatpush1.bf16.msra.mxu0 %v427
  %579 = vmatprep.subr.bf16.mxu0 0
  %580 = vmatpush1.bf16.msra.mxu0 %v428
  %581 = vmatprep.subr.bf16.mxu0 0
  %582 = vmatpush1.bf16.msra.mxu0 %v429
  %583 = vmatprep.mubr.bf16.mxu0 %v163
  %584 = vmatmul.mubr.bf16.gmra.mrb[0].mxu0 %v162
  %v585 = vpop.f32.mrb[0].mxu0
  %v586 = vadd.f32 %v545, %v585
  %v587 = vpop.f32.mrb[0].mxu0
  %v588 = vpop.f32.mrb[0].mxu0
  %v589 = vadd.f32 %v548, %v588
  %v590 = vpop.f32.mrb[0].mxu0
  %591 = vdwg.mxu0
  %592 = vmatprep.subr.bf16.mxu0 0
  %593 = vmatpush1.bf16.msra.mxu0 %v430
  %594 = vmatprep.subr.bf16.mxu0 0
  %595 = vmatpush1.bf16.msra.mxu0 %v431
  %596 = vmatprep.subr.bf16.mxu0 0
  %597 = vmatpush1.bf16.msra.mxu0 %v432
  %598 = vmatprep.subr.bf16.mxu0 0
  %599 = vmatpush1.bf16.msra.mxu0 %v433
  %600 = vmatprep.subr.bf16.mxu0 0
  %601 = vmatpush1.bf16.msra.mxu0 %v434
  %602 = vmatprep.subr.bf16.mxu0 0
  %603 = vmatpush1.bf16.msra.mxu0 %v435
  %604 = vmatprep.subr.bf16.mxu0 0
  %605 = vmatpush1.bf16.msra.mxu0 %v436
  %606 = vmatprep.subr.bf16.mxu0 0
  %607 = vmatpush1.bf16.msra.mxu0 %v437
  %608 = vmatprep.subr.bf16.mxu0 0
  %609 = vmatpush1.bf16.msra.mxu0 %v438
  %610 = vmatprep.subr.bf16.mxu0 0
  %611 = vmatpush1.bf16.msra.mxu0 %v439
  %612 = vmatprep.subr.bf16.mxu0 0
  %613 = vmatpush1.bf16.msra.mxu0 %v440
  %614 = vmatprep.subr.bf16.mxu0 0
  %615 = vmatpush1.bf16.msra.mxu0 %v441
  %616 = vmatprep.subr.bf16.mxu0 0
  %617 = vmatpush1.bf16.msra.mxu0 %v442
  %618 = vmatprep.subr.bf16.mxu0 0
  %619 = vmatpush1.bf16.msra.mxu0 %v443
  %620 = vmatprep.subr.bf16.mxu0 0
  %621 = vmatpush1.bf16.msra.mxu0 %v444
  %622 = vmatprep.subr.bf16.mxu0 0
  %623 = vmatpush1.bf16.msra.mxu0 %v445
  %624 = vmatprep.mubr.bf16.mxu0 %v165
  %625 = vmatmul.mubr.bf16.gmra.mrb[0].mxu0 %v164
  %v626 = vpop.f32.mrb[0].mxu0
  %v627 = vadd.f32 %v586, %v626
  %v628 = vpop.f32.mrb[0].mxu0
  %v629 = vpop.f32.mrb[0].mxu0
  %v630 = vadd.f32 %v589, %v629
  %v631 = vpop.f32.mrb[0].mxu0
  %632 = vdwg.mxu0
  %633 = vmatprep.subr.bf16.mxu0 0
  %634 = vmatpush1.bf16.msra.mxu0 %v446
  %635 = vmatprep.subr.bf16.mxu0 0
  %636 = vmatpush1.bf16.msra.mxu0 %v447
  %637 = vmatprep.subr.bf16.mxu0 0
  %638 = vmatpush1.bf16.msra.mxu0 %v448
  %639 = vmatprep.subr.bf16.mxu0 0
  %640 = vmatpush1.bf16.msra.mxu0 %v449
  %641 = vmatprep.subr.bf16.mxu0 0
  %642 = vmatpush1.bf16.msra.mxu0 %v450
  %643 = vmatprep.subr.bf16.mxu0 0
  %644 = vmatpush1.bf16.msra.mxu0 %v451
  %645 = vmatprep.subr.bf16.mxu0 0
  %646 = vmatpush1.bf16.msra.mxu0 %v452
  %647 = vmatprep.subr.bf16.mxu0 0
  %648 = vmatpush1.bf16.msra.mxu0 %v453
  %649 = vmatprep.subr.bf16.mxu0 0
  %650 = vmatpush1.bf16.msra.mxu0 0
  %651 = vmatprep.subr.bf16.mxu0 0
  %652 = vmatpush1.bf16.msra.mxu0 0
  %653 = vmatprep.subr.bf16.mxu0 0
  %654 = vmatpush1.bf16.msra.mxu0 0
  %655 = vmatprep.subr.bf16.mxu0 0
  %656 = vmatpush1.bf16.msra.mxu0 0
  %657 = vmatprep.subr.bf16.mxu0 0
  %658 = vmatpush1.bf16.msra.mxu0 0
  %659 = vmatprep.subr.bf16.mxu0 0
  %660 = vmatpush1.bf16.msra.mxu0 0
  %661 = vmatprep.subr.bf16.mxu0 0
  %662 = vmatpush1.bf16.msra.mxu0 0
  %663 = vmatprep.subr.bf16.mxu0 0
  %664 = vmatpush1.bf16.msra.mxu0 0
  %665 = vmatprep.mubr.bf16.mxu0 0
  %666 = vmatmul.mubr.bf16.gmra.mrb[0].mxu0 %v166
  %v667 = vpop.f32.mrb[0].mxu0
  %v668 = vadd.f32 %v627, %v667
  %v669 = vpop.f32.mrb[0].mxu0
  %v670 = vpop.f32.mrb[0].mxu0
  %v671 = vadd.f32 %v630, %v670
  %v672 = vpop.f32.mrb[0].mxu0
  %673 = vdwg.mxu0
  %v674 = vld [vmem:[%s2] sm:$0x1]
  %v676 = vlaneseq
  %v677 = vshrl.u32 %v676, 7
  %v678 = vsub.s32 0, %v677
  %v679 = vrot.slane %v674, %v678
  %v681 = vmul.f32 %v668, %v679
  %v682 = vmul.f32 %v671, %v679
  %v683 = vld [vmem:[%s3] sm:$0x1]
  %v685 = vlaneseq
  %v686 = vshrl.u32 %v685, 7
  %v687 = vsub.s32 0, %v686
  %v688 = vrot.slane %v683, %v687
  %v690 = vadd.f32 %v681, %v688
  %v691 = vadd.f32 %v682, %v688
  %v692 = vmax.f32 %v690, 0.0
  %v693 = vmax.f32 %v691, 0.0
  %v694 = vpack.c.bf16 %v693, %v692
  %v696 = vunpack.c.l.b16 %v694
  %v697 = vunpack.c.h.b16 %v694
  %v698 = vpack.c.b16 %v696, %v696
  %v699 = vpack.c.b16 %v697, %v697
  %702 = vst [vmem:[%s4] sm:$0xf] %v698
  %703 = vst [vmem:[%s4 + $0x4] sm:$0xf] %v699
  // Predicated region
  $region18: #{medium_conv_forward.6} parent=0 // pred_check
    _
  $region19: #{medium_conv_forward.6} parent=0 // pred_check_branch
    %705 = sbr.rel (0) target = $region21
  $region20: #{medium_conv_forward.6} parent=0 // pred_region
    _
  $region21: #{medium_conv_forward.6} parent=0 // pred_fallthru
    _
  // Predicated region
  $region22: #{medium_conv_forward.6} parent=0 // pred_check
    _
  $region23: #{medium_conv_forward.6} parent=0 // pred_check_branch
    %707 = sbr.rel (0) target = $region25
  $region24: #{medium_conv_forward.6} parent=0 // pred_region
    _
  $region25: #{medium_conv_forward.6} parent=0 // pred_fallthru
    _

// kernel: medium_conv_forward.7
$region0: #{medium_conv_forward.7}
  #allocation0 [shape = 'u32[]', space=smem, size = 0x4, offset = 0x4, fixed_abs, tag = 'smem constant byte address 0x4 - core index']
  #allocation1 [shape = 'u32[144,128]{1,0:T(1,128)}', space=vmem, size = 0x12000, scoped, tag = 'internal scratch']
  %s0 = inlined_call_operand.vmem [shape: bf16[16,128], index: 0, kind: input, shape index: {}]
  %s1 = inlined_call_operand.vmem [shape: bf16[128,128], index: 1, kind: input, shape index: {}]
  %s2 = inlined_call_operand.vmem [shape: f32[1,128], index: 2, kind: input, shape index: {}]
  %s3 = inlined_call_operand.vmem [shape: f32[1,128], index: 3, kind: input, shape index: {}]
  %s4 = inlined_call_operand.vmem [shape: f32[16,128], index: 4, kind: output, shape index: {}]
  %s5 = sld [smem:[#allocation0]]
  $region26: #{medium_conv_forward.7} parent=0
    _
  %s7 = ssub.s32 1, %s5
  %s8 = scalar_select 0, %s7, %s5
  // Predicated region
  $region2: #{medium_conv_forward.7} parent=0 // pred_check
    _
  $region3: #{medium_conv_forward.7} parent=0 // pred_check_branch
    %10 = sbr.rel (0) target = $region5
  $region4: #{medium_conv_forward.7} parent=0 // pred_region
    _
  $region5: #{medium_conv_forward.7} parent=0 // pred_fallthru
    _
  // Predicated region
  $region6: #{medium_conv_forward.7} parent=0 // pred_check
    _
  $region7: #{medium_conv_forward.7} parent=0 // pred_check_branch
    %12 = sbr.rel (0) target = $region9
  $region8: #{medium_conv_forward.7} parent=0 // pred_region
    _
  $region9: #{medium_conv_forward.7} parent=0 // pred_fallthru
    _
  // Predicated region
  $region10: #{medium_conv_forward.7} parent=0 // pred_check
    _
  $region11: #{medium_conv_forward.7} parent=0 // pred_check_branch
    %14 = sbr.rel (0) target = $region13
  $region12: #{medium_conv_forward.7} parent=0 // pred_region
    _
  $region13: #{medium_conv_forward.7} parent=0 // pred_fallthru
    _
  // Predicated region
  $region14: #{medium_conv_forward.7} parent=0 // pred_check
    _
  $region15: #{medium_conv_forward.7} parent=0 // pred_check_branch
    %16 = sbr.rel (0) target = $region17
  $region16: #{medium_conv_forward.7} parent=0 // pred_region
    _
  $region17: #{medium_conv_forward.7} parent=0 // pred_fallthru
    _
  %v18 = vld [vmem:[%s0] sm:$0xf]
  %v19 = vld [vmem:[%s0 + $0x4] sm:$0xf]
  %v20 = vld [vmem:[%s1] sm:$0xf]
  %v21 = vld [vmem:[%s1 + $0x4] sm:$0xf]
  %v22 = vld [vmem:[%s1 + $0x8] sm:$0xf]
  %v23 = vld [vmem:[%s1 + $0xc] sm:$0xf]
  %v24 = vld [vmem:[%s1 + $0x10] sm:$0xf]
  %v25 = vld [vmem:[%s1 + $0x14] sm:$0xf]
  %v26 = vld [vmem:[%s1 + $0x18] sm:$0xf]
  %v27 = vld [vmem:[%s1 + $0x1c] sm:$0xf]
  %v28 = vld [vmem:[%s1 + $0x20] sm:$0xf]
  %v29 = vld [vmem:[%s1 + $0x24] sm:$0xf]
  %v30 = vld [vmem:[%s1 + $0x28] sm:$0xf]
  %v31 = vld [vmem:[%s1 + $0x2c] sm:$0xf]
  %v32 = vld [vmem:[%s1 + $0x30] sm:$0xf]
  %v33 = vld [vmem:[%s1 + $0x34] sm:$0xf]
  %v34 = vld [vmem:[%s1 + $0x38] sm:$0xf]
  %v35 = vld [vmem:[%s1 + $0x3c] sm:$0xf]
  %v38 = vunpack.c.l.b16 %v18
  %v39 = vunpack.c.l.b16 %v19
  %v40 = vpack.c.b16 %v39, %v38
  %v58 = vunpack.c.l.b16 %v20
  %v59 = vunpack.c.l.b16 %v21
  %v60 = vunpack.c.l.b16 %v22
  %v61 = vunpack.c.l.b16 %v23
  %v62 = vunpack.c.l.b16 %v24
  %v63 = vunpack.c.l.b16 %v25
  %v64 = vunpack.c.l.b16 %v26
  %v65 = vunpack.c.l.b16 %v27
  %v66 = vunpack.c.l.b16 %v28
  %v67 = vunpack.c.l.b16 %v29
  %v68 = vunpack.c.l.b16 %v30
  %v69 = vunpack.c.l.b16 %v31
  %v70 = vunpack.c.l.b16 %v32
  %v71 = vunpack.c.l.b16 %v33
  %v72 = vunpack.c.l.b16 %v34
  %v73 = vunpack.c.l.b16 %v35
  %v74 = vpack.c.b16 %v59, %v58
  %v75 = vpack.c.b16 %v61, %v60
  %v76 = vpack.c.b16 %v63, %v62
  %v77 = vpack.c.b16 %v65, %v64
  %v78 = vpack.c.b16 %v67, %v66
  %v79 = vpack.c.b16 %v69, %v68
  %v80 = vpack.c.b16 %v71, %v70
  %v81 = vpack.c.b16 %v73, %v72
  %90 = vmatprep.subr.bf16.mxu0 0
  %91 = vmatpush1.bf16.msra.mxu0 %v74
  %92 = vmatprep.subr.bf16.mxu0 0
  %93 = vmatpush1.bf16.msra.mxu0 %v75
  %94 = vmatprep.subr.bf16.mxu0 0
  %95 = vmatpush1.bf16.msra.mxu0 %v76
  %96 = vmatprep.subr.bf16.mxu0 0
  %97 = vmatpush1.bf16.msra.mxu0 %v77
  %98 = vmatprep.subr.bf16.mxu0 0
  %99 = vmatpush1.bf16.msra.mxu0 %v78
  %100 = vmatprep.subr.bf16.mxu0 0
  %101 = vmatpush1.bf16.msra.mxu0 %v79
  %102 = vmatprep.subr.bf16.mxu0 0
  %103 = vmatpush1.bf16.msra.mxu0 %v80
  %104 = vmatprep.subr.bf16.mxu0 0
  %105 = vmatpush1.bf16.msra.mxu0 %v81
  %106 = vmatprep.subr.bf16.mxu0 0
  %107 = vmatpush1.bf16.msra.mxu0 0
  %108 = vmatprep.subr.bf16.mxu0 0
  %109 = vmatpush1.bf16.msra.mxu0 0
  %110 = vmatprep.subr.bf16.mxu0 0
  %111 = vmatpush1.bf16.msra.mxu0 0
  %112 = vmatprep.subr.bf16.mxu0 0
  %113 = vmatpush1.bf16.msra.mxu0 0
  %114 = vmatprep.subr.bf16.mxu0 0
  %115 = vmatpush1.bf16.msra.mxu0 0
  %116 = vmatprep.subr.bf16.mxu0 0
  %117 = vmatpush1.bf16.msra.mxu0 0
  %118 = vmatprep.subr.bf16.mxu0 0
  %119 = vmatpush1.bf16.msra.mxu0 0
  %120 = vmatprep.subr.bf16.mxu0 0
  %121 = vmatpush1.bf16.msra.mxu0 0
  %122 = vmatprep.mubr.bf16.mxu0 0
  %123 = vmatmul.mubr.bf16.gmra.mrb[0].mxu0 %v40
  %v124 = vpop.f32.mrb[0].mxu0
  %v125 = vadd.f32 0.0, %v124
  %v126 = vpop.f32.mrb[0].mxu0
  %v127 = vpop.f32.mrb[0].mxu0
  %v128 = vadd.f32 0.0, %v127
  %v129 = vpop.f32.mrb[0].mxu0
  %130 = vdwg.mxu0
  %v131 = vld [vmem:[%s2] sm:$0x1]
  %v133 = vlaneseq
  %v134 = vshrl.u32 %v133, 7
  %v135 = vsub.s32 0, %v134
  %v136 = vrot.slane %v131, %v135
  %v138 = vmul.f32 %v125, %v136
  %v139 = vmul.f32 %v128, %v136
  %v140 = vld [vmem:[%s3] sm:$0x1]
  %v142 = vlaneseq
  %v143 = vshrl.u32 %v142, 7
  %v144 = vsub.s32 0, %v143
  %v145 = vrot.slane %v140, %v144
  %v147 = vadd.f32 %v138, %v145
  %v148 = vadd.f32 %v139, %v145
  %149 = vst [vmem:[%s4] sm:$0xff] %v147
  %150 = vst [vmem:[%s4 + $0x8] sm:$0xff] %v148
  // Predicated region
  $region18: #{medium_conv_forward.7} parent=0 // pred_check
    _
  $region19: #{medium_conv_forward.7} parent=0 // pred_check_branch
    %152 = sbr.rel (0) target = $region21
  $region20: #{medium_conv_forward.7} parent=0 // pred_region
    _
  $region21: #{medium_conv_forward.7} parent=0 // pred_fallthru
    _
  // Predicated region
  $region22: #{medium_conv_forward.7} parent=0 // pred_check
    _
  $region23: #{medium_conv_forward.7} parent=0 // pred_check_branch
    %154 = sbr.rel (0) target = $region25
  $region24: #{medium_conv_forward.7} parent=0 // pred_region
    _
  $region25: #{medium_conv_forward.7} parent=0 // pred_fallthru
    _

</llo_original>
